<compile_context>
chip_gen: v7x
topology: tpu7x:2x2x1
jax: 0.10.0
libtpu: 0.0.40
codegen_flags: <defaults>
</compile_context>

<pallas_src>
import functools

import jax
import jax.numpy as jnp
from jax import lax
from jax.experimental import pallas as pl
from jax.experimental.pallas import tpu as pltpu

INPUT_SIZE = 4
HIDDEN_SIZE = 50
HP = 128  # hidden size padded so each gate is one full 128-lane block


def rnn_lstm_kernel(x_ref, wih_ref, whh_ref, b_ref, wo_ref, bo_ref, out_ref,
                    *, seq_len, batch):
    """Fused single-layer LSTM over the full sequence + output Linear.

    x_ref   : (T*Bp, I)    time-major flattened input, row index = t*Bp + b
    wih_ref : (I, 4*Hp)    input->gates weights, gate-padded to 128 lanes each
    whh_ref : (Hp, 4*Hp)   hidden->gates weights, gate-padded (zero pad rows/cols)
    b_ref   : (1, 4*Hp)    combined bias (b_ih + b_hh), gate-padded
    wo_ref  : (Hp, 1)      output Linear weight (rows >= H are zero)
    bo_ref  : (1, 1)       output Linear bias
    out_ref : (T*Bp, 1)    y for all timesteps, row index = t*Bp + b
    Gate order follows PyTorch: [i, f, g, o]; padded gate lanes stay exactly 0
    for h/c because their weights and biases are zero-padded.
    """
    Hp = whh_ref.shape[0]

    # Loop-invariant loads, hoisted out of the recurrence.
    whh = whh_ref[...]                                     # (Hp, 4Hp)
    wo = wo_ref[...]                                       # (Hp, 1)

    # Input projection for ALL timesteps in one batched MXU matmul (+ bias).
    xp = (jnp.dot(x_ref[...], wih_ref[...],
                  preferred_element_type=jnp.float32)
          + b_ref[...])                                    # (T*Bp, 4Hp)

    h = jnp.zeros((batch, Hp), jnp.float32)
    c = jnp.zeros((batch, Hp), jnp.float32)
    hs = []
    for t in range(seq_len):                               # fully unrolled (static T)
        gates = xp[t * batch:(t + 1) * batch, :] + jnp.dot(
            h, whh, preferred_element_type=jnp.float32)    # (Bp, 4Hp)
        # 128-lane-aligned gate slices (PyTorch order i, f, g, o).
        i_g = jax.nn.sigmoid(gates[:, 0 * Hp:1 * Hp])
        f_g = jax.nn.sigmoid(gates[:, 1 * Hp:2 * Hp])
        g_g = jnp.tanh(gates[:, 2 * Hp:3 * Hp])
        o_g = jax.nn.sigmoid(gates[:, 3 * Hp:4 * Hp])
        c = f_g * c + i_g * g_g
        h = o_g * jnp.tanh(c)
        hs.append(h)

    # Deferred output Linear: one (T*Bp, Hp) @ (Hp, 1) matmul + bias, one store.
    h_all = jnp.concatenate(hs, axis=0)                    # (T*Bp, Hp)
    y = jnp.dot(h_all, wo, preferred_element_type=jnp.float32) + bo_ref[...]
    out_ref[...] = y.astype(out_ref.dtype)


def prepare_params(params, hp=HP):
    """One-time transpose + 128-lane-per-gate zero-padding of LSTM/Linear weights."""
    w_ih, w_hh, b_ih, b_hh, w_out, b_out = params
    H = w_hh.shape[1]

    def gate_pad_t(w, rows_out):
        # w: (4H, rows_in) stacked gates -> (rows_out, 4*hp), transposed per gate.
        rows_in = w.shape[1]
        out = jnp.zeros((rows_out, 4 * hp), jnp.float32)
        for k in range(4):
            out = out.at[:rows_in, k * hp:k * hp + H].set(w[k * H:(k + 1) * H, :].T)
        return out

    wih_p = gate_pad_t(w_ih, w_ih.shape[1])                # (I, 4Hp)
    whh_p = gate_pad_t(w_hh, hp)                           # (Hp, 4Hp)

    b = (b_ih + b_hh).astype(jnp.float32)
    b_p = jnp.zeros((1, 4 * hp), jnp.float32)
    for k in range(4):
        b_p = b_p.at[0, k * hp:k * hp + H].set(b[k * H:(k + 1) * H])

    wo_p = jnp.zeros((hp, 1), jnp.float32).at[:H, :].set(w_out.T)
    bo = b_out.reshape(1, 1).astype(jnp.float32)
    return (wih_p, whh_p, b_p, wo_p, bo)


def rnn_net_forward(x, prepared):
    """x: (B, T, I) float32, batch-first like PyTorch. Returns (B, T, 1)."""
    wih_p, whh_p, b_p, wo_p, bo = prepared
    B, T, I = x.shape
    Bp = ((B + 7) // 8) * 8                                # pad batch to f32 sublanes

    x_tm = jnp.transpose(x, (1, 0, 2))                     # (T, B, I) time-major
    if Bp != B:
        x_tm = jnp.pad(x_tm, ((0, 0), (0, Bp - B), (0, 0)))
    x2d = x_tm.reshape(T * Bp, I)                          # row index = t*Bp + b

    vmem = pl.BlockSpec(memory_space=pltpu.MemorySpace.VMEM)
    kernel = functools.partial(rnn_lstm_kernel, seq_len=T, batch=Bp)
    y = pl.pallas_call(
        kernel,
        out_shape=jax.ShapeDtypeStruct((T * Bp, 1), jnp.float32),
        in_specs=[vmem] * 6,
        out_specs=vmem,
    )(x2d, wih_p, whh_p, b_p, wo_p, bo)

    y = y.reshape(T, Bp, 1)[:, :B, :]                      # (T, B, 1)
    return jnp.transpose(y, (1, 0, 2))                     # (B, T, 1)


def init_params(key, input_size=INPUT_SIZE, hidden_size=HIDDEN_SIZE):
    """Deterministic init mirroring PyTorch LSTM/Linear shapes (uniform +/- 1/sqrt(H))."""
    k1, k2, k3, k4, k5, k6 = jax.random.split(key, 6)
    bound = 1.0 / jnp.sqrt(jnp.float32(hidden_size))
    w_ih = jax.random.uniform(k1, (4 * hidden_size, input_size), jnp.float32, -bound, bound)
    w_hh = jax.random.uniform(k2, (4 * hidden_size, hidden_size), jnp.float32, -bound, bound)
    b_ih = jax.random.uniform(k3, (4 * hidden_size,), jnp.float32, -bound, bound)
    b_hh = jax.random.uniform(k4, (4 * hidden_size,), jnp.float32, -bound, bound)
    w_out = jax.random.uniform(k5, (1, hidden_size), jnp.float32, -bound, bound)
    b_out = jax.random.uniform(k6, (1,), jnp.float32, -bound, bound)
    return (w_ih, w_hh, b_ih, b_hh, w_out, b_out)


def reference_forward(x, params):
    """Pure-JAX reference of the same PyTorch semantics (for correctness check)."""
    w_ih, w_hh, b_ih, b_hh, w_out, b_out = params
    B, T, I = x.shape
    H = w_hh.shape[1]

    def cell(carry, x_t):
        h, c = carry
        gates = x_t @ w_ih.T + b_ih + h @ w_hh.T + b_hh
        i_g = jax.nn.sigmoid(gates[:, 0:H])
        f_g = jax.nn.sigmoid(gates[:, H:2 * H])
        g_g = jnp.tanh(gates[:, 2 * H:3 * H])
        o_g = jax.nn.sigmoid(gates[:, 3 * H:4 * H])
        c_new = f_g * c + i_g * g_g
        h_new = o_g * jnp.tanh(c_new)
        return (h_new, c_new), h_new

    h0 = jnp.zeros((B, H), jnp.float32)
    c0 = jnp.zeros((B, H), jnp.float32)
    _, hs = lax.scan(cell, (h0, c0), jnp.transpose(x, (1, 0, 2)))  # (T, B, H)
    hs = jnp.transpose(hs, (1, 0, 2))                              # (B, T, H)
    return hs @ w_out.T + b_out                                    # (B, T, 1)


if __name__ == "__main__":
    key = jax.random.PRNGKey(0)
    k_params, k_x = jax.random.split(key)

    B, T = 2, 8
    params = init_params(k_params)
    prepared = prepare_params(params)   # one-time transpose/pad, reused per call
    x = jax.random.normal(k_x, (B, T, INPUT_SIZE), jnp.float32)

    out = jax.block_until_ready(rnn_net_forward(x, prepared))
    ref = jax.block_until_ready(reference_forward(x, params))

    assert out.shape == (B, T, 1), out.shape
    assert jnp.allclose(out, ref, atol=2e-5, rtol=2e-5), (
        f"max abs err {jnp.max(jnp.abs(out - ref))}")
    print("KERNEL_OK")
</pallas_src>

<mosaic_0001>
module attributes {stable_mosaic.version = 11 : i64} {
  func.func @rnn_lstm_kernel(%arg0: memref<64x4xf32, #tpu.memory_space<vmem>>, %arg1: memref<4x512xf32, #tpu.memory_space<vmem>>, %arg2: memref<128x512xf32, #tpu.memory_space<vmem>>, %arg3: memref<1x512xf32, #tpu.memory_space<vmem>>, %arg4: memref<128x1xf32, #tpu.memory_space<vmem>>, %arg5: memref<1x1xf32, #tpu.memory_space<vmem>>, %arg6: memref<64x1xf32, #tpu.memory_space<vmem>>) attributes {dimension_semantics = [], scalar_prefetch = 0 : i64, scratch_operands = 0 : i64, tpu.core_type = #tpu.core_type<tc>} {
    %c0 = arith.constant 0 : index
    %c0_0 = arith.constant 0 : index
    %0 = vector.load %arg2[%c0, %c0_0] : memref<128x512xf32, #tpu.memory_space<vmem>>, vector<128x512xf32>
    %c0_1 = arith.constant 0 : index
    %c0_2 = arith.constant 0 : index
    %1 = vector.load %arg4[%c0_1, %c0_2] : memref<128x1xf32, #tpu.memory_space<vmem>>, vector<128x1xf32>
    %c0_3 = arith.constant 0 : index
    %c0_4 = arith.constant 0 : index
    %2 = vector.load %arg0[%c0_3, %c0_4] : memref<64x4xf32, #tpu.memory_space<vmem>>, vector<64x4xf32>
    %c0_5 = arith.constant 0 : index
    %c0_6 = arith.constant 0 : index
    %3 = vector.load %arg1[%c0_5, %c0_6] : memref<4x512xf32, #tpu.memory_space<vmem>>, vector<4x512xf32>
    %cst = arith.constant dense<0.000000e+00> : vector<64x512xf32>
    %4 = tpu.matmul %2, %3, %cst {dimension_numbers = #tpu.dot_dimension_numbers<[1], [0], [0], [1], [0, 0, 1, 1], [], []>} : vector<64x4xf32>, vector<4x512xf32>, vector<64x512xf32> -> vector<64x512xf32>
    %c0_7 = arith.constant 0 : index
    %c0_8 = arith.constant 0 : index
    %5 = vector.load %arg3[%c0_7, %c0_8] : memref<1x512xf32, #tpu.memory_space<vmem>>, vector<1x512xf32>
    %6 = vector.broadcast %5 : vector<1x512xf32> to vector<64x512xf32>
    %7 = arith.addf %4, %6 : vector<64x512xf32>
    %cst_9 = arith.constant 0.000000e+00 : f32
    %8 = vector.broadcast %cst_9 : f32 to vector<8x128xf32>
    %cst_10 = arith.constant 0.000000e+00 : f32
    %9 = vector.broadcast %cst_10 : f32 to vector<8x128xf32>
    %10 = vector.extract_strided_slice %7 {offsets = [0, 0], sizes = [8, 512], strides = [1, 1]} : vector<64x512xf32> to vector<8x512xf32>
    %cst_11 = arith.constant dense<0.000000e+00> : vector<8x512xf32>
    %11 = tpu.matmul %8, %0, %cst_11 {dimension_numbers = #tpu.dot_dimension_numbers<[1], [0], [0], [1], [0, 0, 1, 1], [], []>} : vector<8x128xf32>, vector<128x512xf32>, vector<8x512xf32> -> vector<8x512xf32>
    %12 = arith.addf %10, %11 : vector<8x512xf32>
    %13 = vector.extract_strided_slice %12 {offsets = [0, 0], sizes = [8, 128], strides = [1, 1]} : vector<8x512xf32> to vector<8x128xf32>
    %14 = arith.negf %13 : vector<8x128xf32>
    %15 = math.exp %14 : vector<8x128xf32>
    %cst_12 = arith.constant 1.000000e+00 : f32
    %16 = vector.broadcast %cst_12 : f32 to vector<8x128xf32>
    %17 = arith.addf %16, %15 : vector<8x128xf32>
    %18 = arith.divf %16, %17 : vector<8x128xf32>
    %19 = vector.extract_strided_slice %12 {offsets = [0, 128], sizes = [8, 128], strides = [1, 1]} : vector<8x512xf32> to vector<8x128xf32>
    %20 = arith.negf %19 : vector<8x128xf32>
    %21 = math.exp %20 : vector<8x128xf32>
    %cst_13 = arith.constant 1.000000e+00 : f32
    %22 = vector.broadcast %cst_13 : f32 to vector<8x128xf32>
    %23 = arith.addf %22, %21 : vector<8x128xf32>
    %24 = arith.divf %22, %23 : vector<8x128xf32>
    %25 = vector.extract_strided_slice %12 {offsets = [0, 256], sizes = [8, 128], strides = [1, 1]} : vector<8x512xf32> to vector<8x128xf32>
    %26 = math.tanh %25 : vector<8x128xf32>
    %27 = vector.extract_strided_slice %12 {offsets = [0, 384], sizes = [8, 128], strides = [1, 1]} : vector<8x512xf32> to vector<8x128xf32>
    %28 = arith.negf %27 : vector<8x128xf32>
    %29 = math.exp %28 : vector<8x128xf32>
    %cst_14 = arith.constant 1.000000e+00 : f32
    %30 = vector.broadcast %cst_14 : f32 to vector<8x128xf32>
    %31 = arith.addf %30, %29 : vector<8x128xf32>
    %32 = arith.divf %30, %31 : vector<8x128xf32>
    %33 = arith.mulf %24, %9 : vector<8x128xf32>
    %34 = arith.mulf %18, %26 : vector<8x128xf32>
    %35 = arith.addf %33, %34 : vector<8x128xf32>
    %36 = math.tanh %35 : vector<8x128xf32>
    %37 = arith.mulf %32, %36 : vector<8x128xf32>
    %38 = vector.extract_strided_slice %7 {offsets = [8, 0], sizes = [8, 512], strides = [1, 1]} : vector<64x512xf32> to vector<8x512xf32>
    %cst_15 = arith.constant dense<0.000000e+00> : vector<8x512xf32>
    %39 = tpu.matmul %37, %0, %cst_15 {dimension_numbers = #tpu.dot_dimension_numbers<[1], [0], [0], [1], [0, 0, 1, 1], [], []>} : vector<8x128xf32>, vector<128x512xf32>, vector<8x512xf32> -> vector<8x512xf32>
    %40 = arith.addf %38, %39 : vector<8x512xf32>
    %41 = vector.extract_strided_slice %40 {offsets = [0, 0], sizes = [8, 128], strides = [1, 1]} : vector<8x512xf32> to vector<8x128xf32>
    %42 = arith.negf %41 : vector<8x128xf32>
    %43 = math.exp %42 : vector<8x128xf32>
    %cst_16 = arith.constant 1.000000e+00 : f32
    %44 = vector.broadcast %cst_16 : f32 to vector<8x128xf32>
    %45 = arith.addf %44, %43 : vector<8x128xf32>
    %46 = arith.divf %44, %45 : vector<8x128xf32>
    %47 = vector.extract_strided_slice %40 {offsets = [0, 128], sizes = [8, 128], strides = [1, 1]} : vector<8x512xf32> to vector<8x128xf32>
    %48 = arith.negf %47 : vector<8x128xf32>
    %49 = math.exp %48 : vector<8x128xf32>
    %cst_17 = arith.constant 1.000000e+00 : f32
    %50 = vector.broadcast %cst_17 : f32 to vector<8x128xf32>
    %51 = arith.addf %50, %49 : vector<8x128xf32>
    %52 = arith.divf %50, %51 : vector<8x128xf32>
    %53 = vector.extract_strided_slice %40 {offsets = [0, 256], sizes = [8, 128], strides = [1, 1]} : vector<8x512xf32> to vector<8x128xf32>
    %54 = math.tanh %53 : vector<8x128xf32>
    %55 = vector.extract_strided_slice %40 {offsets = [0, 384], sizes = [8, 128], strides = [1, 1]} : vector<8x512xf32> to vector<8x128xf32>
    %56 = arith.negf %55 : vector<8x128xf32>
    %57 = math.exp %56 : vector<8x128xf32>
    %cst_18 = arith.constant 1.000000e+00 : f32
    %58 = vector.broadcast %cst_18 : f32 to vector<8x128xf32>
    %59 = arith.addf %58, %57 : vector<8x128xf32>
    %60 = arith.divf %58, %59 : vector<8x128xf32>
    %61 = arith.mulf %52, %35 : vector<8x128xf32>
    %62 = arith.mulf %46, %54 : vector<8x128xf32>
    %63 = arith.addf %61, %62 : vector<8x128xf32>
    %64 = math.tanh %63 : vector<8x128xf32>
    %65 = arith.mulf %60, %64 : vector<8x128xf32>
    %66 = vector.extract_strided_slice %7 {offsets = [16, 0], sizes = [8, 512], strides = [1, 1]} : vector<64x512xf32> to vector<8x512xf32>
    %cst_19 = arith.constant dense<0.000000e+00> : vector<8x512xf32>
    %67 = tpu.matmul %65, %0, %cst_19 {dimension_numbers = #tpu.dot_dimension_numbers<[1], [0], [0], [1], [0, 0, 1, 1], [], []>} : vector<8x128xf32>, vector<128x512xf32>, vector<8x512xf32> -> vector<8x512xf32>
    %68 = arith.addf %66, %67 : vector<8x512xf32>
    %69 = vector.extract_strided_slice %68 {offsets = [0, 0], sizes = [8, 128], strides = [1, 1]} : vector<8x512xf32> to vector<8x128xf32>
    %70 = arith.negf %69 : vector<8x128xf32>
    %71 = math.exp %70 : vector<8x128xf32>
    %cst_20 = arith.constant 1.000000e+00 : f32
    %72 = vector.broadcast %cst_20 : f32 to vector<8x128xf32>
    %73 = arith.addf %72, %71 : vector<8x128xf32>
    %74 = arith.divf %72, %73 : vector<8x128xf32>
    %75 = vector.extract_strided_slice %68 {offsets = [0, 128], sizes = [8, 128], strides = [1, 1]} : vector<8x512xf32> to vector<8x128xf32>
    %76 = arith.negf %75 : vector<8x128xf32>
    %77 = math.exp %76 : vector<8x128xf32>
    %cst_21 = arith.constant 1.000000e+00 : f32
    %78 = vector.broadcast %cst_21 : f32 to vector<8x128xf32>
    %79 = arith.addf %78, %77 : vector<8x128xf32>
    %80 = arith.divf %78, %79 : vector<8x128xf32>
    %81 = vector.extract_strided_slice %68 {offsets = [0, 256], sizes = [8, 128], strides = [1, 1]} : vector<8x512xf32> to vector<8x128xf32>
    %82 = math.tanh %81 : vector<8x128xf32>
    %83 = vector.extract_strided_slice %68 {offsets = [0, 384], sizes = [8, 128], strides = [1, 1]} : vector<8x512xf32> to vector<8x128xf32>
    %84 = arith.negf %83 : vector<8x128xf32>
    %85 = math.exp %84 : vector<8x128xf32>
    %cst_22 = arith.constant 1.000000e+00 : f32
    %86 = vector.broadcast %cst_22 : f32 to vector<8x128xf32>
    %87 = arith.addf %86, %85 : vector<8x128xf32>
    %88 = arith.divf %86, %87 : vector<8x128xf32>
    %89 = arith.mulf %80, %63 : vector<8x128xf32>
    %90 = arith.mulf %74, %82 : vector<8x128xf32>
    %91 = arith.addf %89, %90 : vector<8x128xf32>
    %92 = math.tanh %91 : vector<8x128xf32>
    %93 = arith.mulf %88, %92 : vector<8x128xf32>
    %94 = vector.extract_strided_slice %7 {offsets = [24, 0], sizes = [8, 512], strides = [1, 1]} : vector<64x512xf32> to vector<8x512xf32>
    %cst_23 = arith.constant dense<0.000000e+00> : vector<8x512xf32>
    %95 = tpu.matmul %93, %0, %cst_23 {dimension_numbers = #tpu.dot_dimension_numbers<[1], [0], [0], [1], [0, 0, 1, 1], [], []>} : vector<8x128xf32>, vector<128x512xf32>, vector<8x512xf32> -> vector<8x512xf32>
    %96 = arith.addf %94, %95 : vector<8x512xf32>
    %97 = vector.extract_strided_slice %96 {offsets = [0, 0], sizes = [8, 128], strides = [1, 1]} : vector<8x512xf32> to vector<8x128xf32>
    %98 = arith.negf %97 : vector<8x128xf32>
    %99 = math.exp %98 : vector<8x128xf32>
    %cst_24 = arith.constant 1.000000e+00 : f32
    %100 = vector.broadcast %cst_24 : f32 to vector<8x128xf32>
    %101 = arith.addf %100, %99 : vector<8x128xf32>
    %102 = arith.divf %100, %101 : vector<8x128xf32>
    %103 = vector.extract_strided_slice %96 {offsets = [0, 128], sizes = [8, 128], strides = [1, 1]} : vector<8x512xf32> to vector<8x128xf32>
    %104 = arith.negf %103 : vector<8x128xf32>
    %105 = math.exp %104 : vector<8x128xf32>
    %cst_25 = arith.constant 1.000000e+00 : f32
    %106 = vector.broadcast %cst_25 : f32 to vector<8x128xf32>
    %107 = arith.addf %106, %105 : vector<8x128xf32>
    %108 = arith.divf %106, %107 : vector<8x128xf32>
    %109 = vector.extract_strided_slice %96 {offsets = [0, 256], sizes = [8, 128], strides = [1, 1]} : vector<8x512xf32> to vector<8x128xf32>
    %110 = math.tanh %109 : vector<8x128xf32>
    %111 = vector.extract_strided_slice %96 {offsets = [0, 384], sizes = [8, 128], strides = [1, 1]} : vector<8x512xf32> to vector<8x128xf32>
    %112 = arith.negf %111 : vector<8x128xf32>
    %113 = math.exp %112 : vector<8x128xf32>
    %cst_26 = arith.constant 1.000000e+00 : f32
    %114 = vector.broadcast %cst_26 : f32 to vector<8x128xf32>
    %115 = arith.addf %114, %113 : vector<8x128xf32>
    %116 = arith.divf %114, %115 : vector<8x128xf32>
    %117 = arith.mulf %108, %91 : vector<8x128xf32>
    %118 = arith.mulf %102, %110 : vector<8x128xf32>
    %119 = arith.addf %117, %118 : vector<8x128xf32>
    %120 = math.tanh %119 : vector<8x128xf32>
    %121 = arith.mulf %116, %120 : vector<8x128xf32>
    %122 = vector.extract_strided_slice %7 {offsets = [32, 0], sizes = [8, 512], strides = [1, 1]} : vector<64x512xf32> to vector<8x512xf32>
    %cst_27 = arith.constant dense<0.000000e+00> : vector<8x512xf32>
    %123 = tpu.matmul %121, %0, %cst_27 {dimension_numbers = #tpu.dot_dimension_numbers<[1], [0], [0], [1], [0, 0, 1, 1], [], []>} : vector<8x128xf32>, vector<128x512xf32>, vector<8x512xf32> -> vector<8x512xf32>
    %124 = arith.addf %122, %123 : vector<8x512xf32>
    %125 = vector.extract_strided_slice %124 {offsets = [0, 0], sizes = [8, 128], strides = [1, 1]} : vector<8x512xf32> to vector<8x128xf32>
    %126 = arith.negf %125 : vector<8x128xf32>
    %127 = math.exp %126 : vector<8x128xf32>
    %cst_28 = arith.constant 1.000000e+00 : f32
    %128 = vector.broadcast %cst_28 : f32 to vector<8x128xf32>
    %129 = arith.addf %128, %127 : vector<8x128xf32>
    %130 = arith.divf %128, %129 : vector<8x128xf32>
    %131 = vector.extract_strided_slice %124 {offsets = [0, 128], sizes = [8, 128], strides = [1, 1]} : vector<8x512xf32> to vector<8x128xf32>
    %132 = arith.negf %131 : vector<8x128xf32>
    %133 = math.exp %132 : vector<8x128xf32>
    %cst_29 = arith.constant 1.000000e+00 : f32
    %134 = vector.broadcast %cst_29 : f32 to vector<8x128xf32>
    %135 = arith.addf %134, %133 : vector<8x128xf32>
    %136 = arith.divf %134, %135 : vector<8x128xf32>
    %137 = vector.extract_strided_slice %124 {offsets = [0, 256], sizes = [8, 128], strides = [1, 1]} : vector<8x512xf32> to vector<8x128xf32>
    %138 = math.tanh %137 : vector<8x128xf32>
    %139 = vector.extract_strided_slice %124 {offsets = [0, 384], sizes = [8, 128], strides = [1, 1]} : vector<8x512xf32> to vector<8x128xf32>
    %140 = arith.negf %139 : vector<8x128xf32>
    %141 = math.exp %140 : vector<8x128xf32>
    %cst_30 = arith.constant 1.000000e+00 : f32
    %142 = vector.broadcast %cst_30 : f32 to vector<8x128xf32>
    %143 = arith.addf %142, %141 : vector<8x128xf32>
    %144 = arith.divf %142, %143 : vector<8x128xf32>
    %145 = arith.mulf %136, %119 : vector<8x128xf32>
    %146 = arith.mulf %130, %138 : vector<8x128xf32>
    %147 = arith.addf %145, %146 : vector<8x128xf32>
    %148 = math.tanh %147 : vector<8x128xf32>
    %149 = arith.mulf %144, %148 : vector<8x128xf32>
    %150 = vector.extract_strided_slice %7 {offsets = [40, 0], sizes = [8, 512], strides = [1, 1]} : vector<64x512xf32> to vector<8x512xf32>
    %cst_31 = arith.constant dense<0.000000e+00> : vector<8x512xf32>
    %151 = tpu.matmul %149, %0, %cst_31 {dimension_numbers = #tpu.dot_dimension_numbers<[1], [0], [0], [1], [0, 0, 1, 1], [], []>} : vector<8x128xf32>, vector<128x512xf32>, vector<8x512xf32> -> vector<8x512xf32>
    %152 = arith.addf %150, %151 : vector<8x512xf32>
    %153 = vector.extract_strided_slice %152 {offsets = [0, 0], sizes = [8, 128], strides = [1, 1]} : vector<8x512xf32> to vector<8x128xf32>
    %154 = arith.negf %153 : vector<8x128xf32>
    %155 = math.exp %154 : vector<8x128xf32>
    %cst_32 = arith.constant 1.000000e+00 : f32
    %156 = vector.broadcast %cst_32 : f32 to vector<8x128xf32>
    %157 = arith.addf %156, %155 : vector<8x128xf32>
    %158 = arith.divf %156, %157 : vector<8x128xf32>
    %159 = vector.extract_strided_slice %152 {offsets = [0, 128], sizes = [8, 128], strides = [1, 1]} : vector<8x512xf32> to vector<8x128xf32>
    %160 = arith.negf %159 : vector<8x128xf32>
    %161 = math.exp %160 : vector<8x128xf32>
    %cst_33 = arith.constant 1.000000e+00 : f32
    %162 = vector.broadcast %cst_33 : f32 to vector<8x128xf32>
    %163 = arith.addf %162, %161 : vector<8x128xf32>
    %164 = arith.divf %162, %163 : vector<8x128xf32>
    %165 = vector.extract_strided_slice %152 {offsets = [0, 256], sizes = [8, 128], strides = [1, 1]} : vector<8x512xf32> to vector<8x128xf32>
    %166 = math.tanh %165 : vector<8x128xf32>
    %167 = vector.extract_strided_slice %152 {offsets = [0, 384], sizes = [8, 128], strides = [1, 1]} : vector<8x512xf32> to vector<8x128xf32>
    %168 = arith.negf %167 : vector<8x128xf32>
    %169 = math.exp %168 : vector<8x128xf32>
    %cst_34 = arith.constant 1.000000e+00 : f32
    %170 = vector.broadcast %cst_34 : f32 to vector<8x128xf32>
    %171 = arith.addf %170, %169 : vector<8x128xf32>
    %172 = arith.divf %170, %171 : vector<8x128xf32>
    %173 = arith.mulf %164, %147 : vector<8x128xf32>
    %174 = arith.mulf %158, %166 : vector<8x128xf32>
    %175 = arith.addf %173, %174 : vector<8x128xf32>
    %176 = math.tanh %175 : vector<8x128xf32>
    %177 = arith.mulf %172, %176 : vector<8x128xf32>
    %178 = vector.extract_strided_slice %7 {offsets = [48, 0], sizes = [8, 512], strides = [1, 1]} : vector<64x512xf32> to vector<8x512xf32>
    %cst_35 = arith.constant dense<0.000000e+00> : vector<8x512xf32>
    %179 = tpu.matmul %177, %0, %cst_35 {dimension_numbers = #tpu.dot_dimension_numbers<[1], [0], [0], [1], [0, 0, 1, 1], [], []>} : vector<8x128xf32>, vector<128x512xf32>, vector<8x512xf32> -> vector<8x512xf32>
    %180 = arith.addf %178, %179 : vector<8x512xf32>
    %181 = vector.extract_strided_slice %180 {offsets = [0, 0], sizes = [8, 128], strides = [1, 1]} : vector<8x512xf32> to vector<8x128xf32>
    %182 = arith.negf %181 : vector<8x128xf32>
    %183 = math.exp %182 : vector<8x128xf32>
    %cst_36 = arith.constant 1.000000e+00 : f32
    %184 = vector.broadcast %cst_36 : f32 to vector<8x128xf32>
    %185 = arith.addf %184, %183 : vector<8x128xf32>
    %186 = arith.divf %184, %185 : vector<8x128xf32>
    %187 = vector.extract_strided_slice %180 {offsets = [0, 128], sizes = [8, 128], strides = [1, 1]} : vector<8x512xf32> to vector<8x128xf32>
    %188 = arith.negf %187 : vector<8x128xf32>
    %189 = math.exp %188 : vector<8x128xf32>
    %cst_37 = arith.constant 1.000000e+00 : f32
    %190 = vector.broadcast %cst_37 : f32 to vector<8x128xf32>
    %191 = arith.addf %190, %189 : vector<8x128xf32>
    %192 = arith.divf %190, %191 : vector<8x128xf32>
    %193 = vector.extract_strided_slice %180 {offsets = [0, 256], sizes = [8, 128], strides = [1, 1]} : vector<8x512xf32> to vector<8x128xf32>
    %194 = math.tanh %193 : vector<8x128xf32>
    %195 = vector.extract_strided_slice %180 {offsets = [0, 384], sizes = [8, 128], strides = [1, 1]} : vector<8x512xf32> to vector<8x128xf32>
    %196 = arith.negf %195 : vector<8x128xf32>
    %197 = math.exp %196 : vector<8x128xf32>
    %cst_38 = arith.constant 1.000000e+00 : f32
    %198 = vector.broadcast %cst_38 : f32 to vector<8x128xf32>
    %199 = arith.addf %198, %197 : vector<8x128xf32>
    %200 = arith.divf %198, %199 : vector<8x128xf32>
    %201 = arith.mulf %192, %175 : vector<8x128xf32>
    %202 = arith.mulf %186, %194 : vector<8x128xf32>
    %203 = arith.addf %201, %202 : vector<8x128xf32>
    %204 = math.tanh %203 : vector<8x128xf32>
    %205 = arith.mulf %200, %204 : vector<8x128xf32>
    %206 = vector.extract_strided_slice %7 {offsets = [56, 0], sizes = [8, 512], strides = [1, 1]} : vector<64x512xf32> to vector<8x512xf32>
    %cst_39 = arith.constant dense<0.000000e+00> : vector<8x512xf32>
    %207 = tpu.matmul %205, %0, %cst_39 {dimension_numbers = #tpu.dot_dimension_numbers<[1], [0], [0], [1], [0, 0, 1, 1], [], []>} : vector<8x128xf32>, vector<128x512xf32>, vector<8x512xf32> -> vector<8x512xf32>
    %208 = arith.addf %206, %207 : vector<8x512xf32>
    %209 = vector.extract_strided_slice %208 {offsets = [0, 0], sizes = [8, 128], strides = [1, 1]} : vector<8x512xf32> to vector<8x128xf32>
    %210 = arith.negf %209 : vector<8x128xf32>
    %211 = math.exp %210 : vector<8x128xf32>
    %cst_40 = arith.constant 1.000000e+00 : f32
    %212 = vector.broadcast %cst_40 : f32 to vector<8x128xf32>
    %213 = arith.addf %212, %211 : vector<8x128xf32>
    %214 = arith.divf %212, %213 : vector<8x128xf32>
    %215 = vector.extract_strided_slice %208 {offsets = [0, 128], sizes = [8, 128], strides = [1, 1]} : vector<8x512xf32> to vector<8x128xf32>
    %216 = arith.negf %215 : vector<8x128xf32>
    %217 = math.exp %216 : vector<8x128xf32>
    %cst_41 = arith.constant 1.000000e+00 : f32
    %218 = vector.broadcast %cst_41 : f32 to vector<8x128xf32>
    %219 = arith.addf %218, %217 : vector<8x128xf32>
    %220 = arith.divf %218, %219 : vector<8x128xf32>
    %221 = vector.extract_strided_slice %208 {offsets = [0, 256], sizes = [8, 128], strides = [1, 1]} : vector<8x512xf32> to vector<8x128xf32>
    %222 = math.tanh %221 : vector<8x128xf32>
    %223 = vector.extract_strided_slice %208 {offsets = [0, 384], sizes = [8, 128], strides = [1, 1]} : vector<8x512xf32> to vector<8x128xf32>
    %224 = arith.negf %223 : vector<8x128xf32>
    %225 = math.exp %224 : vector<8x128xf32>
    %cst_42 = arith.constant 1.000000e+00 : f32
    %226 = vector.broadcast %cst_42 : f32 to vector<8x128xf32>
    %227 = arith.addf %226, %225 : vector<8x128xf32>
    %228 = arith.divf %226, %227 : vector<8x128xf32>
    %229 = arith.mulf %220, %203 : vector<8x128xf32>
    %230 = arith.mulf %214, %222 : vector<8x128xf32>
    %231 = arith.addf %229, %230 : vector<8x128xf32>
    %232 = math.tanh %231 : vector<8x128xf32>
    %233 = arith.mulf %228, %232 : vector<8x128xf32>
    %234 = tpu.concatenate %37, %65, %93, %121, %149, %177, %205, %233 in 0 : vector<8x128xf32>, vector<8x128xf32>, vector<8x128xf32>, vector<8x128xf32>, vector<8x128xf32>, vector<8x128xf32>, vector<8x128xf32>, vector<8x128xf32> -> vector<64x128xf32>
    %cst_43 = arith.constant dense<0.000000e+00> : vector<64x1xf32>
    %235 = tpu.matmul %234, %1, %cst_43 {dimension_numbers = #tpu.dot_dimension_numbers<[1], [0], [0], [1], [0, 0, 1, 1], [], []>} : vector<64x128xf32>, vector<128x1xf32>, vector<64x1xf32> -> vector<64x1xf32>
    %c0_44 = arith.constant 0 : index
    %c0_45 = arith.constant 0 : index
    %236 = vector.load %arg5[%c0_44, %c0_45] : memref<1x1xf32, #tpu.memory_space<vmem>>, vector<1x1xf32>
    %237 = vector.broadcast %236 : vector<1x1xf32> to vector<64x1xf32>
    %238 = arith.addf %235, %237 : vector<64x1xf32>
    %c0_46 = arith.constant 0 : index
    %c0_47 = arith.constant 0 : index
    %239 = vector.load %arg6[%c0_46, %c0_47] : memref<64x1xf32, #tpu.memory_space<vmem>>, vector<64x1xf32>
    tpu.vector_store %arg6[%c0_46, %c0_47], %238 {strides = array<i32>} : memref<64x1xf32, #tpu.memory_space<vmem>>, vector<64x1xf32>,
    return
  }
}

</mosaic_0001>

<llo_original>
// kernel: tpu_custom_call.1
$region0: #{tpu_custom_call.1}
  #allocation0 [shape = 'u32[]', space=smem, size = 0x4, offset = 0x4, fixed_abs, tag = 'smem constant byte address 0x4 - core index']
  #allocation1 [shape = 'u32[144,128]{1,0:T(1,128)}', space=vmem, size = 0x12000, scoped, tag = 'internal scratch']
  #allocation2 [shape = 'f32[1,1]{1,0:T(1,128)S(1)}', space=vmem, size = 0x200, scoped, tag = 'scoped memory for tpu_custom_call.1']
  %s0 = inlined_call_operand.vmem [shape: f32[64,4], index: 0, kind: input, shape index: {}]
  %s1 = inlined_call_operand.vmem [shape: f32[4,512], index: 1, kind: input, shape index: {}]
  %s2 = inlined_call_operand.hbm [shape: f32[128,512], index: 2, kind: input, shape index: {}]
  %s3 = inlined_call_operand.vmem [shape: f32[1,512], index: 3, kind: input, shape index: {}]
  %s4 = inlined_call_operand.vmem [shape: f32[128,1], index: 4, kind: input, shape index: {}]
  %s5 = inlined_call_operand.<no memory space> [shape: f32[1,1], index: 5, kind: input, shape index: {}]
  %s6 = inlined_call_operand.vmem [shape: f32[64,1], index: 6, kind: output, shape index: {}]
  %s7 = sld [smem:[#allocation0]]
  $region38: #{tpu_custom_call.1} parent=0
    _
  %s9 = ssub.s32 1, %s7
  %s10 = scalar_select 0, %s9, %s7
  %v11 = vstv %s5
  %12 = vst [vmem:[#allocation2] sm:$0x1] %v11
  $region1: #{tpu_custom_call.1} parent=0
    #allocation3 [shape = 'u8[262144]{0}', space=vmem, size = 0x40000, scoped, tag = 'input window, operand 2, single buffered']
    #allocation4 [shape = 's32[1]{0}', space=sflag, size = 0x4, scoped, tag = 'scoped memory for tpu_custom_call.1']
    %13 = vsyncpa [#allocation4], 0
    // Predicated region
    $region2: #{tpu_custom_call.1} parent=1 // pred_check
      _
    $region3: #{tpu_custom_call.1} parent=1 // pred_check_branch
      %15 = sbr.rel (0) target = $region5
    $region4: #{tpu_custom_call.1} parent=1 // pred_region
      _
    $region5: #{tpu_custom_call.1} parent=1 // pred_fallthru
      _
    // Predicated region
    $region6: #{tpu_custom_call.1} parent=1 // pred_check
      _
    $region7: #{tpu_custom_call.1} parent=1 // pred_check_branch
      %17 = sbr.rel (0) target = $region9
    $region8: #{tpu_custom_call.1} parent=1 // pred_region
      _
    $region9: #{tpu_custom_call.1} parent=1 // pred_fallthru
      _
    // Predicated region
    $region10: #{tpu_custom_call.1} parent=1 // pred_check
      _
    $region11: #{tpu_custom_call.1} parent=1 // pred_check_branch
      %19 = sbr.rel (0) target = $region13
    $region12: #{tpu_custom_call.1} parent=1 // pred_region
      %s21 = ssub.s32 8192, 8192
      %22 = vsyncadd [#allocation4], %s21
      %s23 = sshll.u32 [#allocation3], 4
      %s24 = int_to_ptr.vmem [resolvable:$true] %s23
      %29 = dma.hbm_to_vmem [thread:$0]  %s2, 8192, %s24, [#allocation4], 512, 512, 32
    $region13: #{tpu_custom_call.1} parent=1 // pred_fallthru
      _
    // Predicated region
    $region14: #{tpu_custom_call.1} parent=1 // pred_check
      _
    $region15: #{tpu_custom_call.1} parent=1 // pred_check_branch
      %31 = sbr.rel (0) target = $region17
    $region16: #{tpu_custom_call.1} parent=1 // pred_region
      _
    $region17: #{tpu_custom_call.1} parent=1 // pred_fallthru
      _
    // Predicated region
    $region18: #{tpu_custom_call.1} parent=1 // pred_check
      _
    $region19: #{tpu_custom_call.1} parent=1 // pred_check_branch
      %33 = sbr.rel (0) target = $region21
    $region20: #{tpu_custom_call.1} parent=1 // pred_region
      _
    $region21: #{tpu_custom_call.1} parent=1 // pred_fallthru
      _
    // Predicated region
    $region22: #{tpu_custom_call.1} parent=1 // pred_check
      _
    $region23: #{tpu_custom_call.1} parent=1 // pred_check_branch
      %35 = sbr.rel (0) target = $region25
    $region24: #{tpu_custom_call.1} parent=1 // pred_region
      _
    $region25: #{tpu_custom_call.1} parent=1 // pred_fallthru
      _
    // Predicated region
    $region26: #{tpu_custom_call.1} parent=1 // pred_check
      _
    $region27: #{tpu_custom_call.1} parent=1 // pred_check_branch
      %37 = sbr.rel (0) target = $region29
    $region28: #{tpu_custom_call.1} parent=1 // pred_region
      %38 = dma.done [#allocation4], 8192
    $region29: #{tpu_custom_call.1} parent=1 // pred_fallthru
      _
    %v39 = vld [vmem:[#allocation3] sm:$0xff]
    %v40 = vld [vmem:[#allocation3 + $0x8] sm:$0xff]
    %v41 = vld [vmem:[#allocation3 + $0x10] sm:$0xff]
    %v42 = vld [vmem:[#allocation3 + $0x18] sm:$0xff]
    %v43 = vld [vmem:[#allocation3 + $0x20] sm:$0xff]
    %v44 = vld [vmem:[#allocation3 + $0x28] sm:$0xff]
    %v45 = vld [vmem:[#allocation3 + $0x30] sm:$0xff]
    %v46 = vld [vmem:[#allocation3 + $0x38] sm:$0xff]
    %v47 = vld [vmem:[#allocation3 + $0x40] sm:$0xff]
    %v48 = vld [vmem:[#allocation3 + $0x48] sm:$0xff]
    %v49 = vld [vmem:[#allocation3 + $0x50] sm:$0xff]
    %v50 = vld [vmem:[#allocation3 + $0x58] sm:$0xff]
    %v51 = vld [vmem:[#allocation3 + $0x60] sm:$0xff]
    %v52 = vld [vmem:[#allocation3 + $0x68] sm:$0xff]
    %v53 = vld [vmem:[#allocation3 + $0x70] sm:$0xff]
    %v54 = vld [vmem:[#allocation3 + $0x78] sm:$0xff]
    %v55 = vld [vmem:[#allocation3 + $0x80] sm:$0xff]
    %v56 = vld [vmem:[#allocation3 + $0x88] sm:$0xff]
    %v57 = vld [vmem:[#allocation3 + $0x90] sm:$0xff]
    %v58 = vld [vmem:[#allocation3 + $0x98] sm:$0xff]
    %v59 = vld [vmem:[#allocation3 + $0xa0] sm:$0xff]
    %v60 = vld [vmem:[#allocation3 + $0xa8] sm:$0xff]
    %v61 = vld [vmem:[#allocation3 + $0xb0] sm:$0xff]
    %v62 = vld [vmem:[#allocation3 + $0xb8] sm:$0xff]
    %v63 = vld [vmem:[#allocation3 + $0xc0] sm:$0xff]
    %v64 = vld [vmem:[#allocation3 + $0xc8] sm:$0xff]
    %v65 = vld [vmem:[#allocation3 + $0xd0] sm:$0xff]
    %v66 = vld [vmem:[#allocation3 + $0xd8] sm:$0xff]
    %v67 = vld [vmem:[#allocation3 + $0xe0] sm:$0xff]
    %v68 = vld [vmem:[#allocation3 + $0xe8] sm:$0xff]
    %v69 = vld [vmem:[#allocation3 + $0xf0] sm:$0xff]
    %v70 = vld [vmem:[#allocation3 + $0xf8] sm:$0xff]
    %v71 = vld [vmem:[#allocation3 + $0x100] sm:$0xff]
    %v72 = vld [vmem:[#allocation3 + $0x108] sm:$0xff]
    %v73 = vld [vmem:[#allocation3 + $0x110] sm:$0xff]
    %v74 = vld [vmem:[#allocation3 + $0x118] sm:$0xff]
    %v75 = vld [vmem:[#allocation3 + $0x120] sm:$0xff]
    %v76 = vld [vmem:[#allocation3 + $0x128] sm:$0xff]
    %v77 = vld [vmem:[#allocation3 + $0x130] sm:$0xff]
    %v78 = vld [vmem:[#allocation3 + $0x138] sm:$0xff]
    %v79 = vld [vmem:[#allocation3 + $0x140] sm:$0xff]
    %v80 = vld [vmem:[#allocation3 + $0x148] sm:$0xff]
    %v81 = vld [vmem:[#allocation3 + $0x150] sm:$0xff]
    %v82 = vld [vmem:[#allocation3 + $0x158] sm:$0xff]
    %v83 = vld [vmem:[#allocation3 + $0x160] sm:$0xff]
    %v84 = vld [vmem:[#allocation3 + $0x168] sm:$0xff]
    %v85 = vld [vmem:[#allocation3 + $0x170] sm:$0xff]
    %v86 = vld [vmem:[#allocation3 + $0x178] sm:$0xff]
    %v87 = vld [vmem:[#allocation3 + $0x180] sm:$0xff]
    %v88 = vld [vmem:[#allocation3 + $0x188] sm:$0xff]
    %v89 = vld [vmem:[#allocation3 + $0x190] sm:$0xff]
    %v90 = vld [vmem:[#allocation3 + $0x198] sm:$0xff]
    %v91 = vld [vmem:[#allocation3 + $0x1a0] sm:$0xff]
    %v92 = vld [vmem:[#allocation3 + $0x1a8] sm:$0xff]
    %v93 = vld [vmem:[#allocation3 + $0x1b0] sm:$0xff]
    %v94 = vld [vmem:[#allocation3 + $0x1b8] sm:$0xff]
    %v95 = vld [vmem:[#allocation3 + $0x1c0] sm:$0xff]
    %v96 = vld [vmem:[#allocation3 + $0x1c8] sm:$0xff]
    %v97 = vld [vmem:[#allocation3 + $0x1d0] sm:$0xff]
    %v98 = vld [vmem:[#allocation3 + $0x1d8] sm:$0xff]
    %v99 = vld [vmem:[#allocation3 + $0x1e0] sm:$0xff]
    %v100 = vld [vmem:[#allocation3 + $0x1e8] sm:$0xff]
    %v101 = vld [vmem:[#allocation3 + $0x1f0] sm:$0xff]
    %v102 = vld [vmem:[#allocation3 + $0x1f8] sm:$0xff]
    %v103 = vld [vmem:[%s4] sm:$0xff]
    %v104 = vld [vmem:[%s4 + $0x8] sm:$0xff]
    %v105 = vld [vmem:[%s4 + $0x10] sm:$0xff]
    %v106 = vld [vmem:[%s4 + $0x18] sm:$0xff]
    %v107 = vld [vmem:[%s4 + $0x20] sm:$0xff]
    %v108 = vld [vmem:[%s4 + $0x28] sm:$0xff]
    %v109 = vld [vmem:[%s4 + $0x30] sm:$0xff]
    %v110 = vld [vmem:[%s4 + $0x38] sm:$0xff]
    %v111 = vld [vmem:[%s4 + $0x40] sm:$0xff]
    %v112 = vld [vmem:[%s4 + $0x48] sm:$0xff]
    %v113 = vld [vmem:[%s4 + $0x50] sm:$0xff]
    %v114 = vld [vmem:[%s4 + $0x58] sm:$0xff]
    %v115 = vld [vmem:[%s4 + $0x60] sm:$0xff]
    %v116 = vld [vmem:[%s4 + $0x68] sm:$0xff]
    %v117 = vld [vmem:[%s4 + $0x70] sm:$0xff]
    %v118 = vld [vmem:[%s4 + $0x78] sm:$0xff]
    %v119 = vld [vmem:[%s0] sm:$0xff]
    %v120 = vld [vmem:[%s0 + $0x8] sm:$0xff]
    %v121 = vld [vmem:[%s0 + $0x10] sm:$0xff]
    %v122 = vld [vmem:[%s0 + $0x18] sm:$0xff]
    %v123 = vld [vmem:[%s0 + $0x20] sm:$0xff]
    %v124 = vld [vmem:[%s0 + $0x28] sm:$0xff]
    %v125 = vld [vmem:[%s0 + $0x30] sm:$0xff]
    %v126 = vld [vmem:[%s0 + $0x38] sm:$0xff]
    %v127 = vld [vmem:[%s1] sm:$0xff]
    %v128 = vld [vmem:[%s1 + $0x8] sm:$0xff]
    %v129 = vld [vmem:[%s3] sm:$0xf]
    %v131 = vlaneseq
    %v132 = vshrl.u32 %v131, 7
    %v133 = vsub.s32 0, %v132
    %v134 = vrot.slane %v129, %v133
    %v135 = vlaneseq
    %v136 = vshrl.u32 %v135, 7
    %v137 = vsub.s32 1, %v136
    %v138 = vrot.slane %v129, %v137
    %v139 = vlaneseq
    %v140 = vshrl.u32 %v139, 7
    %v141 = vsub.s32 2, %v140
    %v142 = vrot.slane %v129, %v141
    %v143 = vlaneseq
    %v144 = vshrl.u32 %v143, 7
    %v145 = vsub.s32 3, %v144
    %v146 = vrot.slane %v129, %v145
    %v153 = vcombine.high %v127, %v127
    %v154 = vcombine.high %v128, %v128
    %vm155 = vcmask 31744
    %v157 = vsel %vm155, %v119, 0
    %v160 = vsel %vm155, %v120, 0
    %v163 = vsel %vm155, %v121, 0
    %v166 = vsel %vm155, %v122, 0
    %v169 = vsel %vm155, %v123, 0
    %v172 = vsel %vm155, %v124, 0
    %v175 = vsel %vm155, %v125, 0
    %v178 = vsel %vm155, %v126, 0
    %vm180 = vcmask 1043456
    %v181 = vsel %vm180, %v127, 0
    %v183 = vsel %vm180, %v153, 0
    %v185 = vsel %vm180, %v128, 0
    %v187 = vsel %vm180, %v154, 0
    %189 = vmatprep.subr.mxu0 %v183
    %190 = vmatpush1.msra.mxu0 %v181
    %191 = vmatprep.subr.mxu0 0.0
    %192 = vmatpush1.msra.mxu0 0.0
    %193 = vmatprep.subr.mxu0 0.0
    %194 = vmatpush1.msra.mxu0 0.0
    %195 = vmatprep.subr.mxu0 0.0
    %196 = vmatpush1.msra.mxu0 0.0
    %197 = vmatprep.subr.mxu0 0.0
    %198 = vmatpush1.msra.mxu0 0.0
    %199 = vmatprep.subr.mxu0 0.0
    %200 = vmatpush1.msra.mxu0 0.0
    %201 = vmatprep.subr.mxu0 0.0
    %202 = vmatpush1.msra.mxu0 0.0
    %203 = vmatprep.subr.mxu0 0.0
    %204 = vmatpush1.msra.mxu0 0.0
    %205 = vmatprep.subr.mxu0 0.0
    %206 = vmatpush1.msra.mxu0 0.0
    %207 = vmatprep.subr.mxu0 0.0
    %208 = vmatpush1.msra.mxu0 0.0
    %209 = vmatprep.subr.mxu0 0.0
    %210 = vmatpush1.msra.mxu0 0.0
    %211 = vmatprep.subr.mxu0 0.0
    %212 = vmatpush1.msra.mxu0 0.0
    %213 = vmatprep.subr.mxu0 0.0
    %214 = vmatpush1.msra.mxu0 0.0
    %215 = vmatprep.subr.mxu0 0.0
    %216 = vmatpush1.msra.mxu0 0.0
    %217 = vmatprep.subr.mxu0 0.0
    %218 = vmatpush1.msra.mxu0 0.0
    %219 = vmatprep.subr.mxu0 0.0
    %220 = vmatpush1.msra.mxu0 0.0
    %221 = vmatprep.subr.mxu0 0.0
    %222 = vmatpush1.msra.mxu0 0.0
    %223 = vmatprep.subr.mxu0 0.0
    %224 = vmatpush1.msra.mxu0 0.0
    %225 = vmatprep.subr.mxu0 0.0
    %226 = vmatpush1.msra.mxu0 0.0
    %227 = vmatprep.subr.mxu0 0.0
    %228 = vmatpush1.msra.mxu0 0.0
    %229 = vmatprep.subr.mxu0 0.0
    %230 = vmatpush1.msra.mxu0 0.0
    %231 = vmatprep.subr.mxu0 0.0
    %232 = vmatpush1.msra.mxu0 0.0
    %233 = vmatprep.subr.mxu0 0.0
    %234 = vmatpush1.msra.mxu0 0.0
    %235 = vmatprep.subr.mxu0 0.0
    %236 = vmatpush1.msra.mxu0 0.0
    %237 = vmatprep.subr.mxu0 0.0
    %238 = vmatpush1.msra.mxu0 0.0
    %239 = vmatprep.subr.mxu0 0.0
    %240 = vmatpush1.msra.mxu0 0.0
    %241 = vmatprep.subr.mxu0 0.0
    %242 = vmatpush1.msra.mxu0 0.0
    %243 = vmatprep.subr.mxu0 0.0
    %244 = vmatpush1.msra.mxu0 0.0
    %245 = vmatprep.subr.mxu0 0.0
    %246 = vmatpush1.msra.mxu0 0.0
    %247 = vmatprep.subr.mxu0 0.0
    %248 = vmatpush1.msra.mxu0 0.0
    %249 = vmatprep.subr.mxu0 0.0
    %250 = vmatpush1.msra.mxu0 0.0
    %251 = vmatprep.subr.mxu0 0.0
    %252 = vmatpush1.msra.mxu0 0.0
    %253 = vmatprep.mubr.f32.mxu0 0.0
    %254 = vmatmul.mubr.f32.gmra.mrb[0].mxu0 %v157
    %v255 = vpop.f32.mrb[0].mxu0
    %v256 = vadd.f32 %v134, %v255
    %v257 = vpop.f32.mrb[0].mxu0
    %v258 = vadd.f32 %v138, %v257
    %259 = vmatprep.mubr.f32.mxu0 0.0
    %260 = vmatmul.mubr.f32.gmra.mrb[0].mxu0 %v160
    %v261 = vpop.f32.mrb[0].mxu0
    %v262 = vadd.f32 %v134, %v261
    %v263 = vpop.f32.mrb[0].mxu0
    %v264 = vadd.f32 %v138, %v263
    %265 = vmatprep.mubr.f32.mxu0 0.0
    %266 = vmatmul.mubr.f32.gmra.mrb[0].mxu0 %v163
    %v267 = vpop.f32.mrb[0].mxu0
    %v268 = vadd.f32 %v134, %v267
    %v269 = vpop.f32.mrb[0].mxu0
    %v270 = vadd.f32 %v138, %v269
    %271 = vmatprep.mubr.f32.mxu0 0.0
    %272 = vmatmul.mubr.f32.gmra.mrb[0].mxu0 %v166
    %v273 = vpop.f32.mrb[0].mxu0
    %v274 = vadd.f32 %v134, %v273
    %v275 = vpop.f32.mrb[0].mxu0
    %v276 = vadd.f32 %v138, %v275
    %277 = vmatprep.mubr.f32.mxu0 0.0
    %278 = vmatmul.mubr.f32.gmra.mrb[0].mxu0 %v169
    %v279 = vpop.f32.mrb[0].mxu0
    %v280 = vadd.f32 %v134, %v279
    %v281 = vpop.f32.mrb[0].mxu0
    %v282 = vadd.f32 %v138, %v281
    %283 = vmatprep.mubr.f32.mxu0 0.0
    %284 = vmatmul.mubr.f32.gmra.mrb[0].mxu0 %v172
    %v285 = vpop.f32.mrb[0].mxu0
    %v286 = vadd.f32 %v134, %v285
    %v287 = vpop.f32.mrb[0].mxu0
    %v288 = vadd.f32 %v138, %v287
    %289 = vmatprep.mubr.f32.mxu0 0.0
    %290 = vmatmul.mubr.f32.gmra.mrb[0].mxu0 %v175
    %v291 = vpop.f32.mrb[0].mxu0
    %v292 = vadd.f32 %v134, %v291
    %v293 = vpop.f32.mrb[0].mxu0
    %v294 = vadd.f32 %v138, %v293
    %295 = vmatprep.mubr.f32.mxu0 0.0
    %296 = vmatmul.mubr.f32.gmra.mrb[0].mxu0 %v178
    %v297 = vpop.f32.mrb[0].mxu0
    %v298 = vadd.f32 %v134, %v297
    %v299 = vpop.f32.mrb[0].mxu0
    %v300 = vadd.f32 %v138, %v299
    %301 = vdwg.mxu0
    %302 = vmatprep.subr.mxu0 %v187
    %303 = vmatpush1.msra.mxu0 %v185
    %304 = vmatprep.subr.mxu0 0.0
    %305 = vmatpush1.msra.mxu0 0.0
    %306 = vmatprep.subr.mxu0 0.0
    %307 = vmatpush1.msra.mxu0 0.0
    %308 = vmatprep.subr.mxu0 0.0
    %309 = vmatpush1.msra.mxu0 0.0
    %310 = vmatprep.subr.mxu0 0.0
    %311 = vmatpush1.msra.mxu0 0.0
    %312 = vmatprep.subr.mxu0 0.0
    %313 = vmatpush1.msra.mxu0 0.0
    %314 = vmatprep.subr.mxu0 0.0
    %315 = vmatpush1.msra.mxu0 0.0
    %316 = vmatprep.subr.mxu0 0.0
    %317 = vmatpush1.msra.mxu0 0.0
    %318 = vmatprep.subr.mxu0 0.0
    %319 = vmatpush1.msra.mxu0 0.0
    %320 = vmatprep.subr.mxu0 0.0
    %321 = vmatpush1.msra.mxu0 0.0
    %322 = vmatprep.subr.mxu0 0.0
    %323 = vmatpush1.msra.mxu0 0.0
    %324 = vmatprep.subr.mxu0 0.0
    %325 = vmatpush1.msra.mxu0 0.0
    %326 = vmatprep.subr.mxu0 0.0
    %327 = vmatpush1.msra.mxu0 0.0
    %328 = vmatprep.subr.mxu0 0.0
    %329 = vmatpush1.msra.mxu0 0.0
    %330 = vmatprep.subr.mxu0 0.0
    %331 = vmatpush1.msra.mxu0 0.0
    %332 = vmatprep.subr.mxu0 0.0
    %333 = vmatpush1.msra.mxu0 0.0
    %334 = vmatprep.subr.mxu0 0.0
    %335 = vmatpush1.msra.mxu0 0.0
    %336 = vmatprep.subr.mxu0 0.0
    %337 = vmatpush1.msra.mxu0 0.0
    %338 = vmatprep.subr.mxu0 0.0
    %339 = vmatpush1.msra.mxu0 0.0
    %340 = vmatprep.subr.mxu0 0.0
    %341 = vmatpush1.msra.mxu0 0.0
    %342 = vmatprep.subr.mxu0 0.0
    %343 = vmatpush1.msra.mxu0 0.0
    %344 = vmatprep.subr.mxu0 0.0
    %345 = vmatpush1.msra.mxu0 0.0
    %346 = vmatprep.subr.mxu0 0.0
    %347 = vmatpush1.msra.mxu0 0.0
    %348 = vmatprep.subr.mxu0 0.0
    %349 = vmatpush1.msra.mxu0 0.0
    %350 = vmatprep.subr.mxu0 0.0
    %351 = vmatpush1.msra.mxu0 0.0
    %352 = vmatprep.subr.mxu0 0.0
    %353 = vmatpush1.msra.mxu0 0.0
    %354 = vmatprep.subr.mxu0 0.0
    %355 = vmatpush1.msra.mxu0 0.0
    %356 = vmatprep.subr.mxu0 0.0
    %357 = vmatpush1.msra.mxu0 0.0
    %358 = vmatprep.subr.mxu0 0.0
    %359 = vmatpush1.msra.mxu0 0.0
    %360 = vmatprep.subr.mxu0 0.0
    %361 = vmatpush1.msra.mxu0 0.0
    %362 = vmatprep.subr.mxu0 0.0
    %363 = vmatpush1.msra.mxu0 0.0
    %364 = vmatprep.subr.mxu0 0.0
    %365 = vmatpush1.msra.mxu0 0.0
    %366 = vmatprep.mubr.f32.mxu0 0.0
    %367 = vmatmul.mubr.f32.gmra.mrb[0].mxu0 %v157
    %v368 = vpop.f32.mrb[0].mxu0
    %v369 = vadd.f32 %v142, %v368
    %v370 = vpop.f32.mrb[0].mxu0
    %v371 = vadd.f32 %v146, %v370
    %372 = vmatprep.mubr.f32.mxu0 0.0
    %373 = vmatmul.mubr.f32.gmra.mrb[0].mxu0 %v160
    %v374 = vpop.f32.mrb[0].mxu0
    %v375 = vadd.f32 %v142, %v374
    %v376 = vpop.f32.mrb[0].mxu0
    %v377 = vadd.f32 %v146, %v376
    %378 = vmatprep.mubr.f32.mxu0 0.0
    %379 = vmatmul.mubr.f32.gmra.mrb[0].mxu0 %v163
    %v380 = vpop.f32.mrb[0].mxu0
    %v381 = vadd.f32 %v142, %v380
    %v382 = vpop.f32.mrb[0].mxu0
    %v383 = vadd.f32 %v146, %v382
    %384 = vmatprep.mubr.f32.mxu0 0.0
    %385 = vmatmul.mubr.f32.gmra.mrb[0].mxu0 %v166
    %v386 = vpop.f32.mrb[0].mxu0
    %v387 = vadd.f32 %v142, %v386
    %v388 = vpop.f32.mrb[0].mxu0
    %v389 = vadd.f32 %v146, %v388
    %390 = vmatprep.mubr.f32.mxu0 0.0
    %391 = vmatmul.mubr.f32.gmra.mrb[0].mxu0 %v169
    %v392 = vpop.f32.mrb[0].mxu0
    %v393 = vadd.f32 %v142, %v392
    %v394 = vpop.f32.mrb[0].mxu0
    %v395 = vadd.f32 %v146, %v394
    %396 = vmatprep.mubr.f32.mxu0 0.0
    %397 = vmatmul.mubr.f32.gmra.mrb[0].mxu0 %v172
    %v398 = vpop.f32.mrb[0].mxu0
    %v399 = vadd.f32 %v142, %v398
    %v400 = vpop.f32.mrb[0].mxu0
    %v401 = vadd.f32 %v146, %v400
    %402 = vmatprep.mubr.f32.mxu0 0.0
    %403 = vmatmul.mubr.f32.gmra.mrb[0].mxu0 %v175
    %v404 = vpop.f32.mrb[0].mxu0
    %v405 = vadd.f32 %v142, %v404
    %v406 = vpop.f32.mrb[0].mxu0
    %v407 = vadd.f32 %v146, %v406
    %408 = vmatprep.mubr.f32.mxu0 0.0
    %409 = vmatmul.mubr.f32.gmra.mrb[0].mxu0 %v178
    %v410 = vpop.f32.mrb[0].mxu0
    %v411 = vadd.f32 %v142, %v410
    %v412 = vpop.f32.mrb[0].mxu0
    %v413 = vadd.f32 %v146, %v412
    %414 = vdwg.mxu0
    %415 = vmatprep.subr.mxu0 %v40
    %416 = vmatpush1.msra.mxu0 %v39
    %417 = vmatprep.subr.mxu0 %v44
    %418 = vmatpush1.msra.mxu0 %v43
    %419 = vmatprep.subr.mxu0 %v48
    %420 = vmatpush1.msra.mxu0 %v47
    %421 = vmatprep.subr.mxu0 %v52
    %422 = vmatpush1.msra.mxu0 %v51
    %423 = vmatprep.subr.mxu0 %v56
    %424 = vmatpush1.msra.mxu0 %v55
    %425 = vmatprep.subr.mxu0 %v60
    %426 = vmatpush1.msra.mxu0 %v59
    %427 = vmatprep.subr.mxu0 %v64
    %428 = vmatpush1.msra.mxu0 %v63
    %429 = vmatprep.subr.mxu0 %v68
    %430 = vmatpush1.msra.mxu0 %v67
    %431 = vmatprep.subr.mxu0 %v72
    %432 = vmatpush1.msra.mxu0 %v71
    %433 = vmatprep.subr.mxu0 %v76
    %434 = vmatpush1.msra.mxu0 %v75
    %435 = vmatprep.subr.mxu0 %v80
    %436 = vmatpush1.msra.mxu0 %v79
    %437 = vmatprep.subr.mxu0 %v84
    %438 = vmatpush1.msra.mxu0 %v83
    %439 = vmatprep.subr.mxu0 %v88
    %440 = vmatpush1.msra.mxu0 %v87
    %441 = vmatprep.subr.mxu0 %v92
    %442 = vmatpush1.msra.mxu0 %v91
    %443 = vmatprep.subr.mxu0 %v96
    %444 = vmatpush1.msra.mxu0 %v95
    %445 = vmatprep.subr.mxu0 %v100
    %446 = vmatpush1.msra.mxu0 %v99
    %447 = vmatprep.subr.mxu0 0.0
    %448 = vmatpush1.msra.mxu0 0.0
    %449 = vmatprep.subr.mxu0 0.0
    %450 = vmatpush1.msra.mxu0 0.0
    %451 = vmatprep.subr.mxu0 0.0
    %452 = vmatpush1.msra.mxu0 0.0
    %453 = vmatprep.subr.mxu0 0.0
    %454 = vmatpush1.msra.mxu0 0.0
    %455 = vmatprep.subr.mxu0 0.0
    %456 = vmatpush1.msra.mxu0 0.0
    %457 = vmatprep.subr.mxu0 0.0
    %458 = vmatpush1.msra.mxu0 0.0
    %459 = vmatprep.subr.mxu0 0.0
    %460 = vmatpush1.msra.mxu0 0.0
    %461 = vmatprep.subr.mxu0 0.0
    %462 = vmatpush1.msra.mxu0 0.0
    %463 = vmatprep.subr.mxu0 0.0
    %464 = vmatpush1.msra.mxu0 0.0
    %465 = vmatprep.subr.mxu0 0.0
    %466 = vmatpush1.msra.mxu0 0.0
    %467 = vmatprep.subr.mxu0 0.0
    %468 = vmatpush1.msra.mxu0 0.0
    %469 = vmatprep.subr.mxu0 0.0
    %470 = vmatpush1.msra.mxu0 0.0
    %471 = vmatprep.subr.mxu0 0.0
    %472 = vmatpush1.msra.mxu0 0.0
    %473 = vmatprep.subr.mxu0 0.0
    %474 = vmatpush1.msra.mxu0 0.0
    %475 = vmatprep.subr.mxu0 0.0
    %476 = vmatpush1.msra.mxu0 0.0
    %477 = vmatprep.subr.mxu0 0.0
    %478 = vmatpush1.msra.mxu0 0.0
    %479 = vmatprep.mubr.f32.mxu0 0.0
    %480 = vmatmul.mubr.f32.gmra.mrb[0].mxu0 0.0
    %v481 = vpop.f32.mrb[0].mxu0
    %v482 = vadd.f32 0.0, %v481
    %v483 = vpop.f32.mrb[0].mxu0
    %v484 = vadd.f32 0.0, %v483
    %485 = vdwg.mxu0
    %486 = vmatprep.subr.mxu0 %v42
    %487 = vmatpush1.msra.mxu0 %v41
    %488 = vmatprep.subr.mxu0 %v46
    %489 = vmatpush1.msra.mxu0 %v45
    %490 = vmatprep.subr.mxu0 %v50
    %491 = vmatpush1.msra.mxu0 %v49
    %492 = vmatprep.subr.mxu0 %v54
    %493 = vmatpush1.msra.mxu0 %v53
    %494 = vmatprep.subr.mxu0 %v58
    %495 = vmatpush1.msra.mxu0 %v57
    %496 = vmatprep.subr.mxu0 %v62
    %497 = vmatpush1.msra.mxu0 %v61
    %498 = vmatprep.subr.mxu0 %v66
    %499 = vmatpush1.msra.mxu0 %v65
    %500 = vmatprep.subr.mxu0 %v70
    %501 = vmatpush1.msra.mxu0 %v69
    %502 = vmatprep.subr.mxu0 %v74
    %503 = vmatpush1.msra.mxu0 %v73
    %504 = vmatprep.subr.mxu0 %v78
    %505 = vmatpush1.msra.mxu0 %v77
    %506 = vmatprep.subr.mxu0 %v82
    %507 = vmatpush1.msra.mxu0 %v81
    %508 = vmatprep.subr.mxu0 %v86
    %509 = vmatpush1.msra.mxu0 %v85
    %510 = vmatprep.subr.mxu0 %v90
    %511 = vmatpush1.msra.mxu0 %v89
    %512 = vmatprep.subr.mxu0 %v94
    %513 = vmatpush1.msra.mxu0 %v93
    %514 = vmatprep.subr.mxu0 %v98
    %515 = vmatpush1.msra.mxu0 %v97
    %516 = vmatprep.subr.mxu0 %v102
    %517 = vmatpush1.msra.mxu0 %v101
    %518 = vmatprep.subr.mxu0 0.0
    %519 = vmatpush1.msra.mxu0 0.0
    %520 = vmatprep.subr.mxu0 0.0
    %521 = vmatpush1.msra.mxu0 0.0
    %522 = vmatprep.subr.mxu0 0.0
    %523 = vmatpush1.msra.mxu0 0.0
    %524 = vmatprep.subr.mxu0 0.0
    %525 = vmatpush1.msra.mxu0 0.0
    %526 = vmatprep.subr.mxu0 0.0
    %527 = vmatpush1.msra.mxu0 0.0
    %528 = vmatprep.subr.mxu0 0.0
    %529 = vmatpush1.msra.mxu0 0.0
    %530 = vmatprep.subr.mxu0 0.0
    %531 = vmatpush1.msra.mxu0 0.0
    %532 = vmatprep.subr.mxu0 0.0
    %533 = vmatpush1.msra.mxu0 0.0
    %534 = vmatprep.subr.mxu0 0.0
    %535 = vmatpush1.msra.mxu0 0.0
    %536 = vmatprep.subr.mxu0 0.0
    %537 = vmatpush1.msra.mxu0 0.0
    %538 = vmatprep.subr.mxu0 0.0
    %539 = vmatpush1.msra.mxu0 0.0
    %540 = vmatprep.subr.mxu0 0.0
    %541 = vmatpush1.msra.mxu0 0.0
    %542 = vmatprep.subr.mxu0 0.0
    %543 = vmatpush1.msra.mxu0 0.0
    %544 = vmatprep.subr.mxu0 0.0
    %545 = vmatpush1.msra.mxu0 0.0
    %546 = vmatprep.subr.mxu0 0.0
    %547 = vmatpush1.msra.mxu0 0.0
    %548 = vmatprep.subr.mxu0 0.0
    %549 = vmatpush1.msra.mxu0 0.0
    %550 = vmatprep.mubr.f32.mxu0 0.0
    %551 = vmatmul.mubr.f32.gmra.mrb[0].mxu0 0.0
    %v552 = vpop.f32.mrb[0].mxu0
    %v553 = vadd.f32 0.0, %v552
    %v554 = vpop.f32.mrb[0].mxu0
    %v555 = vadd.f32 0.0, %v554
    %556 = vdwg.mxu0
    %v557 = vadd.f32 %v256, %v482
    %v558 = vadd.f32 %v258, %v484
    %v559 = vadd.f32 %v369, %v553
    %v560 = vadd.f32 %v371, %v555
    %v561 = vxor.u32 %v557, 2147483648
    %v562 = vmul.f32 %v561, 1.442695
    %v563 = vpow.pop %v562
    %v564 = vadd.f32 %v563, 1.0
    %v565 = vrcp.pop %v564
    %v566 = vmul.f32 1.0, %v565
    %v567 = vxor.u32 %v558, 2147483648
    %v568 = vmul.f32 %v567, 1.442695
    %v569 = vpow.pop %v568
    %v570 = vadd.f32 %v569, 1.0
    %v571 = vrcp.pop %v570
    %v572 = vmul.f32 1.0, %v571
    %v573 = vtanh.pop %v559
    %v574 = vxor.u32 %v560, 2147483648
    %v575 = vmul.f32 %v574, 1.442695
    %v576 = vpow.pop %v575
    %v577 = vadd.f32 %v576, 1.0
    %v578 = vrcp.pop %v577
    %v579 = vmul.f32 1.0, %v578
    %v580 = vmul.f32 %v572, 0.0
    %v581 = vmul.f32 %v566, %v573
    %v582 = vadd.f32 %v580, %v581
    %v583 = vtanh.pop %v582
    %v584 = vmul.f32 %v579, %v583
    %585 = vmatprep.subr.mxu0 %v40
    %586 = vmatpush1.msra.mxu0 %v39
    %587 = vmatprep.subr.mxu0 %v44
    %588 = vmatpush1.msra.mxu0 %v43
    %589 = vmatprep.subr.mxu0 %v48
    %590 = vmatpush1.msra.mxu0 %v47
    %591 = vmatprep.subr.mxu0 %v52
    %592 = vmatpush1.msra.mxu0 %v51
    %593 = vmatprep.subr.mxu0 %v56
    %594 = vmatpush1.msra.mxu0 %v55
    %595 = vmatprep.subr.mxu0 %v60
    %596 = vmatpush1.msra.mxu0 %v59
    %597 = vmatprep.subr.mxu0 %v64
    %598 = vmatpush1.msra.mxu0 %v63
    %599 = vmatprep.subr.mxu0 %v68
    %600 = vmatpush1.msra.mxu0 %v67
    %601 = vmatprep.subr.mxu0 %v72
    %602 = vmatpush1.msra.mxu0 %v71
    %603 = vmatprep.subr.mxu0 %v76
    %604 = vmatpush1.msra.mxu0 %v75
    %605 = vmatprep.subr.mxu0 %v80
    %606 = vmatpush1.msra.mxu0 %v79
    %607 = vmatprep.subr.mxu0 %v84
    %608 = vmatpush1.msra.mxu0 %v83
    %609 = vmatprep.subr.mxu0 %v88
    %610 = vmatpush1.msra.mxu0 %v87
    %611 = vmatprep.subr.mxu0 %v92
    %612 = vmatpush1.msra.mxu0 %v91
    %613 = vmatprep.subr.mxu0 %v96
    %614 = vmatpush1.msra.mxu0 %v95
    %615 = vmatprep.subr.mxu0 %v100
    %616 = vmatpush1.msra.mxu0 %v99
    %617 = vmatprep.subr.mxu0 0.0
    %618 = vmatpush1.msra.mxu0 0.0
    %619 = vmatprep.subr.mxu0 0.0
    %620 = vmatpush1.msra.mxu0 0.0
    %621 = vmatprep.subr.mxu0 0.0
    %622 = vmatpush1.msra.mxu0 0.0
    %623 = vmatprep.subr.mxu0 0.0
    %624 = vmatpush1.msra.mxu0 0.0
    %625 = vmatprep.subr.mxu0 0.0
    %626 = vmatpush1.msra.mxu0 0.0
    %627 = vmatprep.subr.mxu0 0.0
    %628 = vmatpush1.msra.mxu0 0.0
    %629 = vmatprep.subr.mxu0 0.0
    %630 = vmatpush1.msra.mxu0 0.0
    %631 = vmatprep.subr.mxu0 0.0
    %632 = vmatpush1.msra.mxu0 0.0
    %633 = vmatprep.subr.mxu0 0.0
    %634 = vmatpush1.msra.mxu0 0.0
    %635 = vmatprep.subr.mxu0 0.0
    %636 = vmatpush1.msra.mxu0 0.0
    %637 = vmatprep.subr.mxu0 0.0
    %638 = vmatpush1.msra.mxu0 0.0
    %639 = vmatprep.subr.mxu0 0.0
    %640 = vmatpush1.msra.mxu0 0.0
    %641 = vmatprep.subr.mxu0 0.0
    %642 = vmatpush1.msra.mxu0 0.0
    %643 = vmatprep.subr.mxu0 0.0
    %644 = vmatpush1.msra.mxu0 0.0
    %645 = vmatprep.subr.mxu0 0.0
    %646 = vmatpush1.msra.mxu0 0.0
    %647 = vmatprep.subr.mxu0 0.0
    %648 = vmatpush1.msra.mxu0 0.0
    %649 = vmatprep.mubr.f32.mxu0 0.0
    %650 = vmatmul.mubr.f32.gmra.mrb[0].mxu0 %v584
    %v651 = vpop.f32.mrb[0].mxu0
    %v652 = vadd.f32 0.0, %v651
    %v653 = vpop.f32.mrb[0].mxu0
    %v654 = vadd.f32 0.0, %v653
    %655 = vdwg.mxu0
    %656 = vmatprep.subr.mxu0 %v42
    %657 = vmatpush1.msra.mxu0 %v41
    %658 = vmatprep.subr.mxu0 %v46
    %659 = vmatpush1.msra.mxu0 %v45
    %660 = vmatprep.subr.mxu0 %v50
    %661 = vmatpush1.msra.mxu0 %v49
    %662 = vmatprep.subr.mxu0 %v54
    %663 = vmatpush1.msra.mxu0 %v53
    %664 = vmatprep.subr.mxu0 %v58
    %665 = vmatpush1.msra.mxu0 %v57
    %666 = vmatprep.subr.mxu0 %v62
    %667 = vmatpush1.msra.mxu0 %v61
    %668 = vmatprep.subr.mxu0 %v66
    %669 = vmatpush1.msra.mxu0 %v65
    %670 = vmatprep.subr.mxu0 %v70
    %671 = vmatpush1.msra.mxu0 %v69
    %672 = vmatprep.subr.mxu0 %v74
    %673 = vmatpush1.msra.mxu0 %v73
    %674 = vmatprep.subr.mxu0 %v78
    %675 = vmatpush1.msra.mxu0 %v77
    %676 = vmatprep.subr.mxu0 %v82
    %677 = vmatpush1.msra.mxu0 %v81
    %678 = vmatprep.subr.mxu0 %v86
    %679 = vmatpush1.msra.mxu0 %v85
    %680 = vmatprep.subr.mxu0 %v90
    %681 = vmatpush1.msra.mxu0 %v89
    %682 = vmatprep.subr.mxu0 %v94
    %683 = vmatpush1.msra.mxu0 %v93
    %684 = vmatprep.subr.mxu0 %v98
    %685 = vmatpush1.msra.mxu0 %v97
    %686 = vmatprep.subr.mxu0 %v102
    %687 = vmatpush1.msra.mxu0 %v101
    %688 = vmatprep.subr.mxu0 0.0
    %689 = vmatpush1.msra.mxu0 0.0
    %690 = vmatprep.subr.mxu0 0.0
    %691 = vmatpush1.msra.mxu0 0.0
    %692 = vmatprep.subr.mxu0 0.0
    %693 = vmatpush1.msra.mxu0 0.0
    %694 = vmatprep.subr.mxu0 0.0
    %695 = vmatpush1.msra.mxu0 0.0
    %696 = vmatprep.subr.mxu0 0.0
    %697 = vmatpush1.msra.mxu0 0.0
    %698 = vmatprep.subr.mxu0 0.0
    %699 = vmatpush1.msra.mxu0 0.0
    %700 = vmatprep.subr.mxu0 0.0
    %701 = vmatpush1.msra.mxu0 0.0
    %702 = vmatprep.subr.mxu0 0.0
    %703 = vmatpush1.msra.mxu0 0.0
    %704 = vmatprep.subr.mxu0 0.0
    %705 = vmatpush1.msra.mxu0 0.0
    %706 = vmatprep.subr.mxu0 0.0
    %707 = vmatpush1.msra.mxu0 0.0
    %708 = vmatprep.subr.mxu0 0.0
    %709 = vmatpush1.msra.mxu0 0.0
    %710 = vmatprep.subr.mxu0 0.0
    %711 = vmatpush1.msra.mxu0 0.0
    %712 = vmatprep.subr.mxu0 0.0
    %713 = vmatpush1.msra.mxu0 0.0
    %714 = vmatprep.subr.mxu0 0.0
    %715 = vmatpush1.msra.mxu0 0.0
    %716 = vmatprep.subr.mxu0 0.0
    %717 = vmatpush1.msra.mxu0 0.0
    %718 = vmatprep.subr.mxu0 0.0
    %719 = vmatpush1.msra.mxu0 0.0
    %720 = vmatprep.mubr.f32.mxu0 0.0
    %721 = vmatmul.mubr.f32.gmra.mrb[0].mxu0 %v584
    %v722 = vpop.f32.mrb[0].mxu0
    %v723 = vadd.f32 0.0, %v722
    %v724 = vpop.f32.mrb[0].mxu0
    %v725 = vadd.f32 0.0, %v724
    %726 = vdwg.mxu0
    %v727 = vadd.f32 %v262, %v652
    %v728 = vadd.f32 %v264, %v654
    %v729 = vadd.f32 %v375, %v723
    %v730 = vadd.f32 %v377, %v725
    %v731 = vxor.u32 %v727, 2147483648
    %v732 = vmul.f32 %v731, 1.442695
    %v733 = vpow.pop %v732
    %v734 = vadd.f32 %v733, 1.0
    %v735 = vrcp.pop %v734
    %v736 = vmul.f32 1.0, %v735
    %v737 = vxor.u32 %v728, 2147483648
    %v738 = vmul.f32 %v737, 1.442695
    %v739 = vpow.pop %v738
    %v740 = vadd.f32 %v739, 1.0
    %v741 = vrcp.pop %v740
    %v742 = vmul.f32 1.0, %v741
    %v743 = vtanh.pop %v729
    %v744 = vxor.u32 %v730, 2147483648
    %v745 = vmul.f32 %v744, 1.442695
    %v746 = vpow.pop %v745
    %v747 = vadd.f32 %v746, 1.0
    %v748 = vrcp.pop %v747
    %v749 = vmul.f32 1.0, %v748
    %v750 = vmul.f32 %v742, %v582
    %v751 = vmul.f32 %v736, %v743
    %v752 = vadd.f32 %v750, %v751
    %v753 = vtanh.pop %v752
    %v754 = vmul.f32 %v749, %v753
    %755 = vmatprep.subr.mxu0 %v40
    %756 = vmatpush1.msra.mxu0 %v39
    %757 = vmatprep.subr.mxu0 %v44
    %758 = vmatpush1.msra.mxu0 %v43
    %759 = vmatprep.subr.mxu0 %v48
    %760 = vmatpush1.msra.mxu0 %v47
    %761 = vmatprep.subr.mxu0 %v52
    %762 = vmatpush1.msra.mxu0 %v51
    %763 = vmatprep.subr.mxu0 %v56
    %764 = vmatpush1.msra.mxu0 %v55
    %765 = vmatprep.subr.mxu0 %v60
    %766 = vmatpush1.msra.mxu0 %v59
    %767 = vmatprep.subr.mxu0 %v64
    %768 = vmatpush1.msra.mxu0 %v63
    %769 = vmatprep.subr.mxu0 %v68
    %770 = vmatpush1.msra.mxu0 %v67
    %771 = vmatprep.subr.mxu0 %v72
    %772 = vmatpush1.msra.mxu0 %v71
    %773 = vmatprep.subr.mxu0 %v76
    %774 = vmatpush1.msra.mxu0 %v75
    %775 = vmatprep.subr.mxu0 %v80
    %776 = vmatpush1.msra.mxu0 %v79
    %777 = vmatprep.subr.mxu0 %v84
    %778 = vmatpush1.msra.mxu0 %v83
    %779 = vmatprep.subr.mxu0 %v88
    %780 = vmatpush1.msra.mxu0 %v87
    %781 = vmatprep.subr.mxu0 %v92
    %782 = vmatpush1.msra.mxu0 %v91
    %783 = vmatprep.subr.mxu0 %v96
    %784 = vmatpush1.msra.mxu0 %v95
    %785 = vmatprep.subr.mxu0 %v100
    %786 = vmatpush1.msra.mxu0 %v99
    %787 = vmatprep.subr.mxu0 0.0
    %788 = vmatpush1.msra.mxu0 0.0
    %789 = vmatprep.subr.mxu0 0.0
    %790 = vmatpush1.msra.mxu0 0.0
    %791 = vmatprep.subr.mxu0 0.0
    %792 = vmatpush1.msra.mxu0 0.0
    %793 = vmatprep.subr.mxu0 0.0
    %794 = vmatpush1.msra.mxu0 0.0
    %795 = vmatprep.subr.mxu0 0.0
    %796 = vmatpush1.msra.mxu0 0.0
    %797 = vmatprep.subr.mxu0 0.0
    %798 = vmatpush1.msra.mxu0 0.0
    %799 = vmatprep.subr.mxu0 0.0
    %800 = vmatpush1.msra.mxu0 0.0
    %801 = vmatprep.subr.mxu0 0.0
    %802 = vmatpush1.msra.mxu0 0.0
    %803 = vmatprep.subr.mxu0 0.0
    %804 = vmatpush1.msra.mxu0 0.0
    %805 = vmatprep.subr.mxu0 0.0
    %806 = vmatpush1.msra.mxu0 0.0
    %807 = vmatprep.subr.mxu0 0.0
    %808 = vmatpush1.msra.mxu0 0.0
    %809 = vmatprep.subr.mxu0 0.0
    %810 = vmatpush1.msra.mxu0 0.0
    %811 = vmatprep.subr.mxu0 0.0
    %812 = vmatpush1.msra.mxu0 0.0
    %813 = vmatprep.subr.mxu0 0.0
    %814 = vmatpush1.msra.mxu0 0.0
    %815 = vmatprep.subr.mxu0 0.0
    %816 = vmatpush1.msra.mxu0 0.0
    %817 = vmatprep.subr.mxu0 0.0
    %818 = vmatpush1.msra.mxu0 0.0
    %819 = vmatprep.mubr.f32.mxu0 0.0
    %820 = vmatmul.mubr.f32.gmra.mrb[0].mxu0 %v754
    %v821 = vpop.f32.mrb[0].mxu0
    %v822 = vadd.f32 0.0, %v821
    %v823 = vpop.f32.mrb[0].mxu0
    %v824 = vadd.f32 0.0, %v823
    %825 = vdwg.mxu0
    %826 = vmatprep.subr.mxu0 %v42
    %827 = vmatpush1.msra.mxu0 %v41
    %828 = vmatprep.subr.mxu0 %v46
    %829 = vmatpush1.msra.mxu0 %v45
    %830 = vmatprep.subr.mxu0 %v50
    %831 = vmatpush1.msra.mxu0 %v49
    %832 = vmatprep.subr.mxu0 %v54
    %833 = vmatpush1.msra.mxu0 %v53
    %834 = vmatprep.subr.mxu0 %v58
    %835 = vmatpush1.msra.mxu0 %v57
    %836 = vmatprep.subr.mxu0 %v62
    %837 = vmatpush1.msra.mxu0 %v61
    %838 = vmatprep.subr.mxu0 %v66
    %839 = vmatpush1.msra.mxu0 %v65
    %840 = vmatprep.subr.mxu0 %v70
    %841 = vmatpush1.msra.mxu0 %v69
    %842 = vmatprep.subr.mxu0 %v74
    %843 = vmatpush1.msra.mxu0 %v73
    %844 = vmatprep.subr.mxu0 %v78
    %845 = vmatpush1.msra.mxu0 %v77
    %846 = vmatprep.subr.mxu0 %v82
    %847 = vmatpush1.msra.mxu0 %v81
    %848 = vmatprep.subr.mxu0 %v86
    %849 = vmatpush1.msra.mxu0 %v85
    %850 = vmatprep.subr.mxu0 %v90
    %851 = vmatpush1.msra.mxu0 %v89
    %852 = vmatprep.subr.mxu0 %v94
    %853 = vmatpush1.msra.mxu0 %v93
    %854 = vmatprep.subr.mxu0 %v98
    %855 = vmatpush1.msra.mxu0 %v97
    %856 = vmatprep.subr.mxu0 %v102
    %857 = vmatpush1.msra.mxu0 %v101
    %858 = vmatprep.subr.mxu0 0.0
    %859 = vmatpush1.msra.mxu0 0.0
    %860 = vmatprep.subr.mxu0 0.0
    %861 = vmatpush1.msra.mxu0 0.0
    %862 = vmatprep.subr.mxu0 0.0
    %863 = vmatpush1.msra.mxu0 0.0
    %864 = vmatprep.subr.mxu0 0.0
    %865 = vmatpush1.msra.mxu0 0.0
    %866 = vmatprep.subr.mxu0 0.0
    %867 = vmatpush1.msra.mxu0 0.0
    %868 = vmatprep.subr.mxu0 0.0
    %869 = vmatpush1.msra.mxu0 0.0
    %870 = vmatprep.subr.mxu0 0.0
    %871 = vmatpush1.msra.mxu0 0.0
    %872 = vmatprep.subr.mxu0 0.0
    %873 = vmatpush1.msra.mxu0 0.0
    %874 = vmatprep.subr.mxu0 0.0
    %875 = vmatpush1.msra.mxu0 0.0
    %876 = vmatprep.subr.mxu0 0.0
    %877 = vmatpush1.msra.mxu0 0.0
    %878 = vmatprep.subr.mxu0 0.0
    %879 = vmatpush1.msra.mxu0 0.0
    %880 = vmatprep.subr.mxu0 0.0
    %881 = vmatpush1.msra.mxu0 0.0
    %882 = vmatprep.subr.mxu0 0.0
    %883 = vmatpush1.msra.mxu0 0.0
    %884 = vmatprep.subr.mxu0 0.0
    %885 = vmatpush1.msra.mxu0 0.0
    %886 = vmatprep.subr.mxu0 0.0
    %887 = vmatpush1.msra.mxu0 0.0
    %888 = vmatprep.subr.mxu0 0.0
    %889 = vmatpush1.msra.mxu0 0.0
    %890 = vmatprep.mubr.f32.mxu0 0.0
    %891 = vmatmul.mubr.f32.gmra.mrb[0].mxu0 %v754
    %v892 = vpop.f32.mrb[0].mxu0
    %v893 = vadd.f32 0.0, %v892
    %v894 = vpop.f32.mrb[0].mxu0
    %v895 = vadd.f32 0.0, %v894
    %896 = vdwg.mxu0
    %v897 = vadd.f32 %v268, %v822
    %v898 = vadd.f32 %v270, %v824
    %v899 = vadd.f32 %v381, %v893
    %v900 = vadd.f32 %v383, %v895
    %v901 = vxor.u32 %v897, 2147483648
    %v902 = vmul.f32 %v901, 1.442695
    %v903 = vpow.pop %v902
    %v904 = vadd.f32 %v903, 1.0
    %v905 = vrcp.pop %v904
    %v906 = vmul.f32 1.0, %v905
    %v907 = vxor.u32 %v898, 2147483648
    %v908 = vmul.f32 %v907, 1.442695
    %v909 = vpow.pop %v908
    %v910 = vadd.f32 %v909, 1.0
    %v911 = vrcp.pop %v910
    %v912 = vmul.f32 1.0, %v911
    %v913 = vtanh.pop %v899
    %v914 = vxor.u32 %v900, 2147483648
    %v915 = vmul.f32 %v914, 1.442695
    %v916 = vpow.pop %v915
    %v917 = vadd.f32 %v916, 1.0
    %v918 = vrcp.pop %v917
    %v919 = vmul.f32 1.0, %v918
    %v920 = vmul.f32 %v912, %v752
    %v921 = vmul.f32 %v906, %v913
    %v922 = vadd.f32 %v920, %v921
    %v923 = vtanh.pop %v922
    %v924 = vmul.f32 %v919, %v923
    %925 = vmatprep.subr.mxu0 %v40
    %926 = vmatpush1.msra.mxu0 %v39
    %927 = vmatprep.subr.mxu0 %v44
    %928 = vmatpush1.msra.mxu0 %v43
    %929 = vmatprep.subr.mxu0 %v48
    %930 = vmatpush1.msra.mxu0 %v47
    %931 = vmatprep.subr.mxu0 %v52
    %932 = vmatpush1.msra.mxu0 %v51
    %933 = vmatprep.subr.mxu0 %v56
    %934 = vmatpush1.msra.mxu0 %v55
    %935 = vmatprep.subr.mxu0 %v60
    %936 = vmatpush1.msra.mxu0 %v59
    %937 = vmatprep.subr.mxu0 %v64
    %938 = vmatpush1.msra.mxu0 %v63
    %939 = vmatprep.subr.mxu0 %v68
    %940 = vmatpush1.msra.mxu0 %v67
    %941 = vmatprep.subr.mxu0 %v72
    %942 = vmatpush1.msra.mxu0 %v71
    %943 = vmatprep.subr.mxu0 %v76
    %944 = vmatpush1.msra.mxu0 %v75
    %945 = vmatprep.subr.mxu0 %v80
    %946 = vmatpush1.msra.mxu0 %v79
    %947 = vmatprep.subr.mxu0 %v84
    %948 = vmatpush1.msra.mxu0 %v83
    %949 = vmatprep.subr.mxu0 %v88
    %950 = vmatpush1.msra.mxu0 %v87
    %951 = vmatprep.subr.mxu0 %v92
    %952 = vmatpush1.msra.mxu0 %v91
    %953 = vmatprep.subr.mxu0 %v96
    %954 = vmatpush1.msra.mxu0 %v95
    %955 = vmatprep.subr.mxu0 %v100
    %956 = vmatpush1.msra.mxu0 %v99
    %957 = vmatprep.subr.mxu0 0.0
    %958 = vmatpush1.msra.mxu0 0.0
    %959 = vmatprep.subr.mxu0 0.0
    %960 = vmatpush1.msra.mxu0 0.0
    %961 = vmatprep.subr.mxu0 0.0
    %962 = vmatpush1.msra.mxu0 0.0
    %963 = vmatprep.subr.mxu0 0.0
    %964 = vmatpush1.msra.mxu0 0.0
    %965 = vmatprep.subr.mxu0 0.0
    %966 = vmatpush1.msra.mxu0 0.0
    %967 = vmatprep.subr.mxu0 0.0
    %968 = vmatpush1.msra.mxu0 0.0
    %969 = vmatprep.subr.mxu0 0.0
    %970 = vmatpush1.msra.mxu0 0.0
    %971 = vmatprep.subr.mxu0 0.0
    %972 = vmatpush1.msra.mxu0 0.0
    %973 = vmatprep.subr.mxu0 0.0
    %974 = vmatpush1.msra.mxu0 0.0
    %975 = vmatprep.subr.mxu0 0.0
    %976 = vmatpush1.msra.mxu0 0.0
    %977 = vmatprep.subr.mxu0 0.0
    %978 = vmatpush1.msra.mxu0 0.0
    %979 = vmatprep.subr.mxu0 0.0
    %980 = vmatpush1.msra.mxu0 0.0
    %981 = vmatprep.subr.mxu0 0.0
    %982 = vmatpush1.msra.mxu0 0.0
    %983 = vmatprep.subr.mxu0 0.0
    %984 = vmatpush1.msra.mxu0 0.0
    %985 = vmatprep.subr.mxu0 0.0
    %986 = vmatpush1.msra.mxu0 0.0
    %987 = vmatprep.subr.mxu0 0.0
    %988 = vmatpush1.msra.mxu0 0.0
    %989 = vmatprep.mubr.f32.mxu0 0.0
    %990 = vmatmul.mubr.f32.gmra.mrb[0].mxu0 %v924
    %v991 = vpop.f32.mrb[0].mxu0
    %v992 = vadd.f32 0.0, %v991
    %v993 = vpop.f32.mrb[0].mxu0
    %v994 = vadd.f32 0.0, %v993
    %995 = vdwg.mxu0
    %996 = vmatprep.subr.mxu0 %v42
    %997 = vmatpush1.msra.mxu0 %v41
    %998 = vmatprep.subr.mxu0 %v46
    %999 = vmatpush1.msra.mxu0 %v45
    %1000 = vmatprep.subr.mxu0 %v50
    %1001 = vmatpush1.msra.mxu0 %v49
    %1002 = vmatprep.subr.mxu0 %v54
    %1003 = vmatpush1.msra.mxu0 %v53
    %1004 = vmatprep.subr.mxu0 %v58
    %1005 = vmatpush1.msra.mxu0 %v57
    %1006 = vmatprep.subr.mxu0 %v62
    %1007 = vmatpush1.msra.mxu0 %v61
    %1008 = vmatprep.subr.mxu0 %v66
    %1009 = vmatpush1.msra.mxu0 %v65
    %1010 = vmatprep.subr.mxu0 %v70
    %1011 = vmatpush1.msra.mxu0 %v69
    %1012 = vmatprep.subr.mxu0 %v74
    %1013 = vmatpush1.msra.mxu0 %v73
    %1014 = vmatprep.subr.mxu0 %v78
    %1015 = vmatpush1.msra.mxu0 %v77
    %1016 = vmatprep.subr.mxu0 %v82
    %1017 = vmatpush1.msra.mxu0 %v81
    %1018 = vmatprep.subr.mxu0 %v86
    %1019 = vmatpush1.msra.mxu0 %v85
    %1020 = vmatprep.subr.mxu0 %v90
    %1021 = vmatpush1.msra.mxu0 %v89
    %1022 = vmatprep.subr.mxu0 %v94
    %1023 = vmatpush1.msra.mxu0 %v93
    %1024 = vmatprep.subr.mxu0 %v98
    %1025 = vmatpush1.msra.mxu0 %v97
    %1026 = vmatprep.subr.mxu0 %v102
    %1027 = vmatpush1.msra.mxu0 %v101
    %1028 = vmatprep.subr.mxu0 0.0
    %1029 = vmatpush1.msra.mxu0 0.0
    %1030 = vmatprep.subr.mxu0 0.0
    %1031 = vmatpush1.msra.mxu0 0.0
    %1032 = vmatprep.subr.mxu0 0.0
    %1033 = vmatpush1.msra.mxu0 0.0
    %1034 = vmatprep.subr.mxu0 0.0
    %1035 = vmatpush1.msra.mxu0 0.0
    %1036 = vmatprep.subr.mxu0 0.0
    %1037 = vmatpush1.msra.mxu0 0.0
    %1038 = vmatprep.subr.mxu0 0.0
    %1039 = vmatpush1.msra.mxu0 0.0
    %1040 = vmatprep.subr.mxu0 0.0
    %1041 = vmatpush1.msra.mxu0 0.0
    %1042 = vmatprep.subr.mxu0 0.0
    %1043 = vmatpush1.msra.mxu0 0.0
    %1044 = vmatprep.subr.mxu0 0.0
    %1045 = vmatpush1.msra.mxu0 0.0
    %1046 = vmatprep.subr.mxu0 0.0
    %1047 = vmatpush1.msra.mxu0 0.0
    %1048 = vmatprep.subr.mxu0 0.0
    %1049 = vmatpush1.msra.mxu0 0.0
    %1050 = vmatprep.subr.mxu0 0.0
    %1051 = vmatpush1.msra.mxu0 0.0
    %1052 = vmatprep.subr.mxu0 0.0
    %1053 = vmatpush1.msra.mxu0 0.0
    %1054 = vmatprep.subr.mxu0 0.0
    %1055 = vmatpush1.msra.mxu0 0.0
    %1056 = vmatprep.subr.mxu0 0.0
    %1057 = vmatpush1.msra.mxu0 0.0
    %1058 = vmatprep.subr.mxu0 0.0
    %1059 = vmatpush1.msra.mxu0 0.0
    %1060 = vmatprep.mubr.f32.mxu0 0.0
    %1061 = vmatmul.mubr.f32.gmra.mrb[0].mxu0 %v924
    %v1062 = vpop.f32.mrb[0].mxu0
    %v1063 = vadd.f32 0.0, %v1062
    %v1064 = vpop.f32.mrb[0].mxu0
    %v1065 = vadd.f32 0.0, %v1064
    %1066 = vdwg.mxu0
    %v1067 = vadd.f32 %v274, %v992
    %v1068 = vadd.f32 %v276, %v994
    %v1069 = vadd.f32 %v387, %v1063
    %v1070 = vadd.f32 %v389, %v1065
    %v1071 = vxor.u32 %v1067, 2147483648
    %v1072 = vmul.f32 %v1071, 1.442695
    %v1073 = vpow.pop %v1072
    %v1074 = vadd.f32 %v1073, 1.0
    %v1075 = vrcp.pop %v1074
    %v1076 = vmul.f32 1.0, %v1075
    %v1077 = vxor.u32 %v1068, 2147483648
    %v1078 = vmul.f32 %v1077, 1.442695
    %v1079 = vpow.pop %v1078
    %v1080 = vadd.f32 %v1079, 1.0
    %v1081 = vrcp.pop %v1080
    %v1082 = vmul.f32 1.0, %v1081
    %v1083 = vtanh.pop %v1069
    %v1084 = vxor.u32 %v1070, 2147483648
    %v1085 = vmul.f32 %v1084, 1.442695
    %v1086 = vpow.pop %v1085
    %v1087 = vadd.f32 %v1086, 1.0
    %v1088 = vrcp.pop %v1087
    %v1089 = vmul.f32 1.0, %v1088
    %v1090 = vmul.f32 %v1082, %v922
    %v1091 = vmul.f32 %v1076, %v1083
    %v1092 = vadd.f32 %v1090, %v1091
    %v1093 = vtanh.pop %v1092
    %v1094 = vmul.f32 %v1089, %v1093
    %1095 = vmatprep.subr.mxu0 %v40
    %1096 = vmatpush1.msra.mxu0 %v39
    %1097 = vmatprep.subr.mxu0 %v44
    %1098 = vmatpush1.msra.mxu0 %v43
    %1099 = vmatprep.subr.mxu0 %v48
    %1100 = vmatpush1.msra.mxu0 %v47
    %1101 = vmatprep.subr.mxu0 %v52
    %1102 = vmatpush1.msra.mxu0 %v51
    %1103 = vmatprep.subr.mxu0 %v56
    %1104 = vmatpush1.msra.mxu0 %v55
    %1105 = vmatprep.subr.mxu0 %v60
    %1106 = vmatpush1.msra.mxu0 %v59
    %1107 = vmatprep.subr.mxu0 %v64
    %1108 = vmatpush1.msra.mxu0 %v63
    %1109 = vmatprep.subr.mxu0 %v68
    %1110 = vmatpush1.msra.mxu0 %v67
    %1111 = vmatprep.subr.mxu0 %v72
    %1112 = vmatpush1.msra.mxu0 %v71
    %1113 = vmatprep.subr.mxu0 %v76
    %1114 = vmatpush1.msra.mxu0 %v75
    %1115 = vmatprep.subr.mxu0 %v80
    %1116 = vmatpush1.msra.mxu0 %v79
    %1117 = vmatprep.subr.mxu0 %v84
    %1118 = vmatpush1.msra.mxu0 %v83
    %1119 = vmatprep.subr.mxu0 %v88
    %1120 = vmatpush1.msra.mxu0 %v87
    %1121 = vmatprep.subr.mxu0 %v92
    %1122 = vmatpush1.msra.mxu0 %v91
    %1123 = vmatprep.subr.mxu0 %v96
    %1124 = vmatpush1.msra.mxu0 %v95
    %1125 = vmatprep.subr.mxu0 %v100
    %1126 = vmatpush1.msra.mxu0 %v99
    %1127 = vmatprep.subr.mxu0 0.0
    %1128 = vmatpush1.msra.mxu0 0.0
    %1129 = vmatprep.subr.mxu0 0.0
    %1130 = vmatpush1.msra.mxu0 0.0
    %1131 = vmatprep.subr.mxu0 0.0
    %1132 = vmatpush1.msra.mxu0 0.0
    %1133 = vmatprep.subr.mxu0 0.0
    %1134 = vmatpush1.msra.mxu0 0.0
    %1135 = vmatprep.subr.mxu0 0.0
    %1136 = vmatpush1.msra.mxu0 0.0
    %1137 = vmatprep.subr.mxu0 0.0
    %1138 = vmatpush1.msra.mxu0 0.0
    %1139 = vmatprep.subr.mxu0 0.0
    %1140 = vmatpush1.msra.mxu0 0.0
    %1141 = vmatprep.subr.mxu0 0.0
    %1142 = vmatpush1.msra.mxu0 0.0
    %1143 = vmatprep.subr.mxu0 0.0
    %1144 = vmatpush1.msra.mxu0 0.0
    %1145 = vmatprep.subr.mxu0 0.0
    %1146 = vmatpush1.msra.mxu0 0.0
    %1147 = vmatprep.subr.mxu0 0.0
    %1148 = vmatpush1.msra.mxu0 0.0
    %1149 = vmatprep.subr.mxu0 0.0
    %1150 = vmatpush1.msra.mxu0 0.0
    %1151 = vmatprep.subr.mxu0 0.0
    %1152 = vmatpush1.msra.mxu0 0.0
    %1153 = vmatprep.subr.mxu0 0.0
    %1154 = vmatpush1.msra.mxu0 0.0
    %1155 = vmatprep.subr.mxu0 0.0
    %1156 = vmatpush1.msra.mxu0 0.0
    %1157 = vmatprep.subr.mxu0 0.0
    %1158 = vmatpush1.msra.mxu0 0.0
    %1159 = vmatprep.mubr.f32.mxu0 0.0
    %1160 = vmatmul.mubr.f32.gmra.mrb[0].mxu0 %v1094
    %v1161 = vpop.f32.mrb[0].mxu0
    %v1162 = vadd.f32 0.0, %v1161
    %v1163 = vpop.f32.mrb[0].mxu0
    %v1164 = vadd.f32 0.0, %v1163
    %1165 = vdwg.mxu0
    %1166 = vmatprep.subr.mxu0 %v42
    %1167 = vmatpush1.msra.mxu0 %v41
    %1168 = vmatprep.subr.mxu0 %v46
    %1169 = vmatpush1.msra.mxu0 %v45
    %1170 = vmatprep.subr.mxu0 %v50
    %1171 = vmatpush1.msra.mxu0 %v49
    %1172 = vmatprep.subr.mxu0 %v54
    %1173 = vmatpush1.msra.mxu0 %v53
    %1174 = vmatprep.subr.mxu0 %v58
    %1175 = vmatpush1.msra.mxu0 %v57
    %1176 = vmatprep.subr.mxu0 %v62
    %1177 = vmatpush1.msra.mxu0 %v61
    %1178 = vmatprep.subr.mxu0 %v66
    %1179 = vmatpush1.msra.mxu0 %v65
    %1180 = vmatprep.subr.mxu0 %v70
    %1181 = vmatpush1.msra.mxu0 %v69
    %1182 = vmatprep.subr.mxu0 %v74
    %1183 = vmatpush1.msra.mxu0 %v73
    %1184 = vmatprep.subr.mxu0 %v78
    %1185 = vmatpush1.msra.mxu0 %v77
    %1186 = vmatprep.subr.mxu0 %v82
    %1187 = vmatpush1.msra.mxu0 %v81
    %1188 = vmatprep.subr.mxu0 %v86
    %1189 = vmatpush1.msra.mxu0 %v85
    %1190 = vmatprep.subr.mxu0 %v90
    %1191 = vmatpush1.msra.mxu0 %v89
    %1192 = vmatprep.subr.mxu0 %v94
    %1193 = vmatpush1.msra.mxu0 %v93
    %1194 = vmatprep.subr.mxu0 %v98
    %1195 = vmatpush1.msra.mxu0 %v97
    %1196 = vmatprep.subr.mxu0 %v102
    %1197 = vmatpush1.msra.mxu0 %v101
    %1198 = vmatprep.subr.mxu0 0.0
    %1199 = vmatpush1.msra.mxu0 0.0
    %1200 = vmatprep.subr.mxu0 0.0
    %1201 = vmatpush1.msra.mxu0 0.0
    %1202 = vmatprep.subr.mxu0 0.0
    %1203 = vmatpush1.msra.mxu0 0.0
    %1204 = vmatprep.subr.mxu0 0.0
    %1205 = vmatpush1.msra.mxu0 0.0
    %1206 = vmatprep.subr.mxu0 0.0
    %1207 = vmatpush1.msra.mxu0 0.0
    %1208 = vmatprep.subr.mxu0 0.0
    %1209 = vmatpush1.msra.mxu0 0.0
    %1210 = vmatprep.subr.mxu0 0.0
    %1211 = vmatpush1.msra.mxu0 0.0
    %1212 = vmatprep.subr.mxu0 0.0
    %1213 = vmatpush1.msra.mxu0 0.0
    %1214 = vmatprep.subr.mxu0 0.0
    %1215 = vmatpush1.msra.mxu0 0.0
    %1216 = vmatprep.subr.mxu0 0.0
    %1217 = vmatpush1.msra.mxu0 0.0
    %1218 = vmatprep.subr.mxu0 0.0
    %1219 = vmatpush1.msra.mxu0 0.0
    %1220 = vmatprep.subr.mxu0 0.0
    %1221 = vmatpush1.msra.mxu0 0.0
    %1222 = vmatprep.subr.mxu0 0.0
    %1223 = vmatpush1.msra.mxu0 0.0
    %1224 = vmatprep.subr.mxu0 0.0
    %1225 = vmatpush1.msra.mxu0 0.0
    %1226 = vmatprep.subr.mxu0 0.0
    %1227 = vmatpush1.msra.mxu0 0.0
    %1228 = vmatprep.subr.mxu0 0.0
    %1229 = vmatpush1.msra.mxu0 0.0
    %1230 = vmatprep.mubr.f32.mxu0 0.0
    %1231 = vmatmul.mubr.f32.gmra.mrb[0].mxu0 %v1094
    %v1232 = vpop.f32.mrb[0].mxu0
    %v1233 = vadd.f32 0.0, %v1232
    %v1234 = vpop.f32.mrb[0].mxu0
    %v1235 = vadd.f32 0.0, %v1234
    %1236 = vdwg.mxu0
    %v1237 = vadd.f32 %v280, %v1162
    %v1238 = vadd.f32 %v282, %v1164
    %v1239 = vadd.f32 %v393, %v1233
    %v1240 = vadd.f32 %v395, %v1235
    %v1241 = vxor.u32 %v1237, 2147483648
    %v1242 = vmul.f32 %v1241, 1.442695
    %v1243 = vpow.pop %v1242
    %v1244 = vadd.f32 %v1243, 1.0
    %v1245 = vrcp.pop %v1244
    %v1246 = vmul.f32 1.0, %v1245
    %v1247 = vxor.u32 %v1238, 2147483648
    %v1248 = vmul.f32 %v1247, 1.442695
    %v1249 = vpow.pop %v1248
    %v1250 = vadd.f32 %v1249, 1.0
    %v1251 = vrcp.pop %v1250
    %v1252 = vmul.f32 1.0, %v1251
    %v1253 = vtanh.pop %v1239
    %v1254 = vxor.u32 %v1240, 2147483648
    %v1255 = vmul.f32 %v1254, 1.442695
    %v1256 = vpow.pop %v1255
    %v1257 = vadd.f32 %v1256, 1.0
    %v1258 = vrcp.pop %v1257
    %v1259 = vmul.f32 1.0, %v1258
    %v1260 = vmul.f32 %v1252, %v1092
    %v1261 = vmul.f32 %v1246, %v1253
    %v1262 = vadd.f32 %v1260, %v1261
    %v1263 = vtanh.pop %v1262
    %v1264 = vmul.f32 %v1259, %v1263
    %1265 = vmatprep.subr.mxu0 %v40
    %1266 = vmatpush1.msra.mxu0 %v39
    %1267 = vmatprep.subr.mxu0 %v44
    %1268 = vmatpush1.msra.mxu0 %v43
    %1269 = vmatprep.subr.mxu0 %v48
    %1270 = vmatpush1.msra.mxu0 %v47
    %1271 = vmatprep.subr.mxu0 %v52
    %1272 = vmatpush1.msra.mxu0 %v51
    %1273 = vmatprep.subr.mxu0 %v56
    %1274 = vmatpush1.msra.mxu0 %v55
    %1275 = vmatprep.subr.mxu0 %v60
    %1276 = vmatpush1.msra.mxu0 %v59
    %1277 = vmatprep.subr.mxu0 %v64
    %1278 = vmatpush1.msra.mxu0 %v63
    %1279 = vmatprep.subr.mxu0 %v68
    %1280 = vmatpush1.msra.mxu0 %v67
    %1281 = vmatprep.subr.mxu0 %v72
    %1282 = vmatpush1.msra.mxu0 %v71
    %1283 = vmatprep.subr.mxu0 %v76
    %1284 = vmatpush1.msra.mxu0 %v75
    %1285 = vmatprep.subr.mxu0 %v80
    %1286 = vmatpush1.msra.mxu0 %v79
    %1287 = vmatprep.subr.mxu0 %v84
    %1288 = vmatpush1.msra.mxu0 %v83
    %1289 = vmatprep.subr.mxu0 %v88
    %1290 = vmatpush1.msra.mxu0 %v87
    %1291 = vmatprep.subr.mxu0 %v92
    %1292 = vmatpush1.msra.mxu0 %v91
    %1293 = vmatprep.subr.mxu0 %v96
    %1294 = vmatpush1.msra.mxu0 %v95
    %1295 = vmatprep.subr.mxu0 %v100
    %1296 = vmatpush1.msra.mxu0 %v99
    %1297 = vmatprep.subr.mxu0 0.0
    %1298 = vmatpush1.msra.mxu0 0.0
    %1299 = vmatprep.subr.mxu0 0.0
    %1300 = vmatpush1.msra.mxu0 0.0
    %1301 = vmatprep.subr.mxu0 0.0
    %1302 = vmatpush1.msra.mxu0 0.0
    %1303 = vmatprep.subr.mxu0 0.0
    %1304 = vmatpush1.msra.mxu0 0.0
    %1305 = vmatprep.subr.mxu0 0.0
    %1306 = vmatpush1.msra.mxu0 0.0
    %1307 = vmatprep.subr.mxu0 0.0
    %1308 = vmatpush1.msra.mxu0 0.0
    %1309 = vmatprep.subr.mxu0 0.0
    %1310 = vmatpush1.msra.mxu0 0.0
    %1311 = vmatprep.subr.mxu0 0.0
    %1312 = vmatpush1.msra.mxu0 0.0
    %1313 = vmatprep.subr.mxu0 0.0
    %1314 = vmatpush1.msra.mxu0 0.0
    %1315 = vmatprep.subr.mxu0 0.0
    %1316 = vmatpush1.msra.mxu0 0.0
    %1317 = vmatprep.subr.mxu0 0.0
    %1318 = vmatpush1.msra.mxu0 0.0
    %1319 = vmatprep.subr.mxu0 0.0
    %1320 = vmatpush1.msra.mxu0 0.0
    %1321 = vmatprep.subr.mxu0 0.0
    %1322 = vmatpush1.msra.mxu0 0.0
    %1323 = vmatprep.subr.mxu0 0.0
    %1324 = vmatpush1.msra.mxu0 0.0
    %1325 = vmatprep.subr.mxu0 0.0
    %1326 = vmatpush1.msra.mxu0 0.0
    %1327 = vmatprep.subr.mxu0 0.0
    %1328 = vmatpush1.msra.mxu0 0.0
    %1329 = vmatprep.mubr.f32.mxu0 0.0
    %1330 = vmatmul.mubr.f32.gmra.mrb[0].mxu0 %v1264
    %v1331 = vpop.f32.mrb[0].mxu0
    %v1332 = vadd.f32 0.0, %v1331
    %v1333 = vpop.f32.mrb[0].mxu0
    %v1334 = vadd.f32 0.0, %v1333
    %1335 = vdwg.mxu0
    %1336 = vmatprep.subr.mxu0 %v42
    %1337 = vmatpush1.msra.mxu0 %v41
    %1338 = vmatprep.subr.mxu0 %v46
    %1339 = vmatpush1.msra.mxu0 %v45
    %1340 = vmatprep.subr.mxu0 %v50
    %1341 = vmatpush1.msra.mxu0 %v49
    %1342 = vmatprep.subr.mxu0 %v54
    %1343 = vmatpush1.msra.mxu0 %v53
    %1344 = vmatprep.subr.mxu0 %v58
    %1345 = vmatpush1.msra.mxu0 %v57
    %1346 = vmatprep.subr.mxu0 %v62
    %1347 = vmatpush1.msra.mxu0 %v61
    %1348 = vmatprep.subr.mxu0 %v66
    %1349 = vmatpush1.msra.mxu0 %v65
    %1350 = vmatprep.subr.mxu0 %v70
    %1351 = vmatpush1.msra.mxu0 %v69
    %1352 = vmatprep.subr.mxu0 %v74
    %1353 = vmatpush1.msra.mxu0 %v73
    %1354 = vmatprep.subr.mxu0 %v78
    %1355 = vmatpush1.msra.mxu0 %v77
    %1356 = vmatprep.subr.mxu0 %v82
    %1357 = vmatpush1.msra.mxu0 %v81
    %1358 = vmatprep.subr.mxu0 %v86
    %1359 = vmatpush1.msra.mxu0 %v85
    %1360 = vmatprep.subr.mxu0 %v90
    %1361 = vmatpush1.msra.mxu0 %v89
    %1362 = vmatprep.subr.mxu0 %v94
    %1363 = vmatpush1.msra.mxu0 %v93
    %1364 = vmatprep.subr.mxu0 %v98
    %1365 = vmatpush1.msra.mxu0 %v97
    %1366 = vmatprep.subr.mxu0 %v102
    %1367 = vmatpush1.msra.mxu0 %v101
    %1368 = vmatprep.subr.mxu0 0.0
    %1369 = vmatpush1.msra.mxu0 0.0
    %1370 = vmatprep.subr.mxu0 0.0
    %1371 = vmatpush1.msra.mxu0 0.0
    %1372 = vmatprep.subr.mxu0 0.0
    %1373 = vmatpush1.msra.mxu0 0.0
    %1374 = vmatprep.subr.mxu0 0.0
    %1375 = vmatpush1.msra.mxu0 0.0
    %1376 = vmatprep.subr.mxu0 0.0
    %1377 = vmatpush1.msra.mxu0 0.0
    %1378 = vmatprep.subr.mxu0 0.0
    %1379 = vmatpush1.msra.mxu0 0.0
    %1380 = vmatprep.subr.mxu0 0.0
    %1381 = vmatpush1.msra.mxu0 0.0
    %1382 = vmatprep.subr.mxu0 0.0
    %1383 = vmatpush1.msra.mxu0 0.0
    %1384 = vmatprep.subr.mxu0 0.0
    %1385 = vmatpush1.msra.mxu0 0.0
    %1386 = vmatprep.subr.mxu0 0.0
    %1387 = vmatpush1.msra.mxu0 0.0
    %1388 = vmatprep.subr.mxu0 0.0
    %1389 = vmatpush1.msra.mxu0 0.0
    %1390 = vmatprep.subr.mxu0 0.0
    %1391 = vmatpush1.msra.mxu0 0.0
    %1392 = vmatprep.subr.mxu0 0.0
    %1393 = vmatpush1.msra.mxu0 0.0
    %1394 = vmatprep.subr.mxu0 0.0
    %1395 = vmatpush1.msra.mxu0 0.0
    %1396 = vmatprep.subr.mxu0 0.0
    %1397 = vmatpush1.msra.mxu0 0.0
    %1398 = vmatprep.subr.mxu0 0.0
    %1399 = vmatpush1.msra.mxu0 0.0
    %1400 = vmatprep.mubr.f32.mxu0 0.0
    %1401 = vmatmul.mubr.f32.gmra.mrb[0].mxu0 %v1264
    %v1402 = vpop.f32.mrb[0].mxu0
    %v1403 = vadd.f32 0.0, %v1402
    %v1404 = vpop.f32.mrb[0].mxu0
    %v1405 = vadd.f32 0.0, %v1404
    %1406 = vdwg.mxu0
    %v1407 = vadd.f32 %v286, %v1332
    %v1408 = vadd.f32 %v288, %v1334
    %v1409 = vadd.f32 %v399, %v1403
    %v1410 = vadd.f32 %v401, %v1405
    %v1411 = vxor.u32 %v1407, 2147483648
    %v1412 = vmul.f32 %v1411, 1.442695
    %v1413 = vpow.pop %v1412
    %v1414 = vadd.f32 %v1413, 1.0
    %v1415 = vrcp.pop %v1414
    %v1416 = vmul.f32 1.0, %v1415
    %v1417 = vxor.u32 %v1408, 2147483648
    %v1418 = vmul.f32 %v1417, 1.442695
    %v1419 = vpow.pop %v1418
    %v1420 = vadd.f32 %v1419, 1.0
    %v1421 = vrcp.pop %v1420
    %v1422 = vmul.f32 1.0, %v1421
    %v1423 = vtanh.pop %v1409
    %v1424 = vxor.u32 %v1410, 2147483648
    %v1425 = vmul.f32 %v1424, 1.442695
    %v1426 = vpow.pop %v1425
    %v1427 = vadd.f32 %v1426, 1.0
    %v1428 = vrcp.pop %v1427
    %v1429 = vmul.f32 1.0, %v1428
    %v1430 = vmul.f32 %v1422, %v1262
    %v1431 = vmul.f32 %v1416, %v1423
    %v1432 = vadd.f32 %v1430, %v1431
    %v1433 = vtanh.pop %v1432
    %v1434 = vmul.f32 %v1429, %v1433
    %1435 = vmatprep.subr.mxu0 %v40
    %1436 = vmatpush1.msra.mxu0 %v39
    %1437 = vmatprep.subr.mxu0 %v44
    %1438 = vmatpush1.msra.mxu0 %v43
    %1439 = vmatprep.subr.mxu0 %v48
    %1440 = vmatpush1.msra.mxu0 %v47
    %1441 = vmatprep.subr.mxu0 %v52
    %1442 = vmatpush1.msra.mxu0 %v51
    %1443 = vmatprep.subr.mxu0 %v56
    %1444 = vmatpush1.msra.mxu0 %v55
    %1445 = vmatprep.subr.mxu0 %v60
    %1446 = vmatpush1.msra.mxu0 %v59
    %1447 = vmatprep.subr.mxu0 %v64
    %1448 = vmatpush1.msra.mxu0 %v63
    %1449 = vmatprep.subr.mxu0 %v68
    %1450 = vmatpush1.msra.mxu0 %v67
    %1451 = vmatprep.subr.mxu0 %v72
    %1452 = vmatpush1.msra.mxu0 %v71
    %1453 = vmatprep.subr.mxu0 %v76
    %1454 = vmatpush1.msra.mxu0 %v75
    %1455 = vmatprep.subr.mxu0 %v80
    %1456 = vmatpush1.msra.mxu0 %v79
    %1457 = vmatprep.subr.mxu0 %v84
    %1458 = vmatpush1.msra.mxu0 %v83
    %1459 = vmatprep.subr.mxu0 %v88
    %1460 = vmatpush1.msra.mxu0 %v87
    %1461 = vmatprep.subr.mxu0 %v92
    %1462 = vmatpush1.msra.mxu0 %v91
    %1463 = vmatprep.subr.mxu0 %v96
    %1464 = vmatpush1.msra.mxu0 %v95
    %1465 = vmatprep.subr.mxu0 %v100
    %1466 = vmatpush1.msra.mxu0 %v99
    %1467 = vmatprep.subr.mxu0 0.0
    %1468 = vmatpush1.msra.mxu0 0.0
    %1469 = vmatprep.subr.mxu0 0.0
    %1470 = vmatpush1.msra.mxu0 0.0
    %1471 = vmatprep.subr.mxu0 0.0
    %1472 = vmatpush1.msra.mxu0 0.0
    %1473 = vmatprep.subr.mxu0 0.0
    %1474 = vmatpush1.msra.mxu0 0.0
    %1475 = vmatprep.subr.mxu0 0.0
    %1476 = vmatpush1.msra.mxu0 0.0
    %1477 = vmatprep.subr.mxu0 0.0
    %1478 = vmatpush1.msra.mxu0 0.0
    %1479 = vmatprep.subr.mxu0 0.0
    %1480 = vmatpush1.msra.mxu0 0.0
    %1481 = vmatprep.subr.mxu0 0.0
    %1482 = vmatpush1.msra.mxu0 0.0
    %1483 = vmatprep.subr.mxu0 0.0
    %1484 = vmatpush1.msra.mxu0 0.0
    %1485 = vmatprep.subr.mxu0 0.0
    %1486 = vmatpush1.msra.mxu0 0.0
    %1487 = vmatprep.subr.mxu0 0.0
    %1488 = vmatpush1.msra.mxu0 0.0
    %1489 = vmatprep.subr.mxu0 0.0
    %1490 = vmatpush1.msra.mxu0 0.0
    %1491 = vmatprep.subr.mxu0 0.0
    %1492 = vmatpush1.msra.mxu0 0.0
    %1493 = vmatprep.subr.mxu0 0.0
    %1494 = vmatpush1.msra.mxu0 0.0
    %1495 = vmatprep.subr.mxu0 0.0
    %1496 = vmatpush1.msra.mxu0 0.0
    %1497 = vmatprep.subr.mxu0 0.0
    %1498 = vmatpush1.msra.mxu0 0.0
    %1499 = vmatprep.mubr.f32.mxu0 0.0
    %1500 = vmatmul.mubr.f32.gmra.mrb[0].mxu0 %v1434
    %v1501 = vpop.f32.mrb[0].mxu0
    %v1502 = vadd.f32 0.0, %v1501
    %v1503 = vpop.f32.mrb[0].mxu0
    %v1504 = vadd.f32 0.0, %v1503
    %1505 = vdwg.mxu0
    %1506 = vmatprep.subr.mxu0 %v42
    %1507 = vmatpush1.msra.mxu0 %v41
    %1508 = vmatprep.subr.mxu0 %v46
    %1509 = vmatpush1.msra.mxu0 %v45
    %1510 = vmatprep.subr.mxu0 %v50
    %1511 = vmatpush1.msra.mxu0 %v49
    %1512 = vmatprep.subr.mxu0 %v54
    %1513 = vmatpush1.msra.mxu0 %v53
    %1514 = vmatprep.subr.mxu0 %v58
    %1515 = vmatpush1.msra.mxu0 %v57
    %1516 = vmatprep.subr.mxu0 %v62
    %1517 = vmatpush1.msra.mxu0 %v61
    %1518 = vmatprep.subr.mxu0 %v66
    %1519 = vmatpush1.msra.mxu0 %v65
    %1520 = vmatprep.subr.mxu0 %v70
    %1521 = vmatpush1.msra.mxu0 %v69
    %1522 = vmatprep.subr.mxu0 %v74
    %1523 = vmatpush1.msra.mxu0 %v73
    %1524 = vmatprep.subr.mxu0 %v78
    %1525 = vmatpush1.msra.mxu0 %v77
    %1526 = vmatprep.subr.mxu0 %v82
    %1527 = vmatpush1.msra.mxu0 %v81
    %1528 = vmatprep.subr.mxu0 %v86
    %1529 = vmatpush1.msra.mxu0 %v85
    %1530 = vmatprep.subr.mxu0 %v90
    %1531 = vmatpush1.msra.mxu0 %v89
    %1532 = vmatprep.subr.mxu0 %v94
    %1533 = vmatpush1.msra.mxu0 %v93
    %1534 = vmatprep.subr.mxu0 %v98
    %1535 = vmatpush1.msra.mxu0 %v97
    %1536 = vmatprep.subr.mxu0 %v102
    %1537 = vmatpush1.msra.mxu0 %v101
    %1538 = vmatprep.subr.mxu0 0.0
    %1539 = vmatpush1.msra.mxu0 0.0
    %1540 = vmatprep.subr.mxu0 0.0
    %1541 = vmatpush1.msra.mxu0 0.0
    %1542 = vmatprep.subr.mxu0 0.0
    %1543 = vmatpush1.msra.mxu0 0.0
    %1544 = vmatprep.subr.mxu0 0.0
    %1545 = vmatpush1.msra.mxu0 0.0
    %1546 = vmatprep.subr.mxu0 0.0
    %1547 = vmatpush1.msra.mxu0 0.0
    %1548 = vmatprep.subr.mxu0 0.0
    %1549 = vmatpush1.msra.mxu0 0.0
    %1550 = vmatprep.subr.mxu0 0.0
    %1551 = vmatpush1.msra.mxu0 0.0
    %1552 = vmatprep.subr.mxu0 0.0
    %1553 = vmatpush1.msra.mxu0 0.0
    %1554 = vmatprep.subr.mxu0 0.0
    %1555 = vmatpush1.msra.mxu0 0.0
    %1556 = vmatprep.subr.mxu0 0.0
    %1557 = vmatpush1.msra.mxu0 0.0
    %1558 = vmatprep.subr.mxu0 0.0
    %1559 = vmatpush1.msra.mxu0 0.0
    %1560 = vmatprep.subr.mxu0 0.0
    %1561 = vmatpush1.msra.mxu0 0.0
    %1562 = vmatprep.subr.mxu0 0.0
    %1563 = vmatpush1.msra.mxu0 0.0
    %1564 = vmatprep.subr.mxu0 0.0
    %1565 = vmatpush1.msra.mxu0 0.0
    %1566 = vmatprep.subr.mxu0 0.0
    %1567 = vmatpush1.msra.mxu0 0.0
    %1568 = vmatprep.subr.mxu0 0.0
    %1569 = vmatpush1.msra.mxu0 0.0
    %1570 = vmatprep.mubr.f32.mxu0 0.0
    %1571 = vmatmul.mubr.f32.gmra.mrb[0].mxu0 %v1434
    %v1572 = vpop.f32.mrb[0].mxu0
    %v1573 = vadd.f32 0.0, %v1572
    %v1574 = vpop.f32.mrb[0].mxu0
    %v1575 = vadd.f32 0.0, %v1574
    %1576 = vdwg.mxu0
    %v1577 = vadd.f32 %v292, %v1502
    %v1578 = vadd.f32 %v294, %v1504
    %v1579 = vadd.f32 %v405, %v1573
    %v1580 = vadd.f32 %v407, %v1575
    %v1581 = vxor.u32 %v1577, 2147483648
    %v1582 = vmul.f32 %v1581, 1.442695
    %v1583 = vpow.pop %v1582
    %v1584 = vadd.f32 %v1583, 1.0
    %v1585 = vrcp.pop %v1584
    %v1586 = vmul.f32 1.0, %v1585
    %v1587 = vxor.u32 %v1578, 2147483648
    %v1588 = vmul.f32 %v1587, 1.442695
    %v1589 = vpow.pop %v1588
    %v1590 = vadd.f32 %v1589, 1.0
    %v1591 = vrcp.pop %v1590
    %v1592 = vmul.f32 1.0, %v1591
    %v1593 = vtanh.pop %v1579
    %v1594 = vxor.u32 %v1580, 2147483648
    %v1595 = vmul.f32 %v1594, 1.442695
    %v1596 = vpow.pop %v1595
    %v1597 = vadd.f32 %v1596, 1.0
    %v1598 = vrcp.pop %v1597
    %v1599 = vmul.f32 1.0, %v1598
    %v1600 = vmul.f32 %v1592, %v1432
    %v1601 = vmul.f32 %v1586, %v1593
    %v1602 = vadd.f32 %v1600, %v1601
    %v1603 = vtanh.pop %v1602
    %v1604 = vmul.f32 %v1599, %v1603
    %1605 = vmatprep.subr.mxu0 %v40
    %1606 = vmatpush1.msra.mxu0 %v39
    %1607 = vmatprep.subr.mxu0 %v44
    %1608 = vmatpush1.msra.mxu0 %v43
    %1609 = vmatprep.subr.mxu0 %v48
    %1610 = vmatpush1.msra.mxu0 %v47
    %1611 = vmatprep.subr.mxu0 %v52
    %1612 = vmatpush1.msra.mxu0 %v51
    %1613 = vmatprep.subr.mxu0 %v56
    %1614 = vmatpush1.msra.mxu0 %v55
    %1615 = vmatprep.subr.mxu0 %v60
    %1616 = vmatpush1.msra.mxu0 %v59
    %1617 = vmatprep.subr.mxu0 %v64
    %1618 = vmatpush1.msra.mxu0 %v63
    %1619 = vmatprep.subr.mxu0 %v68
    %1620 = vmatpush1.msra.mxu0 %v67
    %1621 = vmatprep.subr.mxu0 %v72
    %1622 = vmatpush1.msra.mxu0 %v71
    %1623 = vmatprep.subr.mxu0 %v76
    %1624 = vmatpush1.msra.mxu0 %v75
    %1625 = vmatprep.subr.mxu0 %v80
    %1626 = vmatpush1.msra.mxu0 %v79
    %1627 = vmatprep.subr.mxu0 %v84
    %1628 = vmatpush1.msra.mxu0 %v83
    %1629 = vmatprep.subr.mxu0 %v88
    %1630 = vmatpush1.msra.mxu0 %v87
    %1631 = vmatprep.subr.mxu0 %v92
    %1632 = vmatpush1.msra.mxu0 %v91
    %1633 = vmatprep.subr.mxu0 %v96
    %1634 = vmatpush1.msra.mxu0 %v95
    %1635 = vmatprep.subr.mxu0 %v100
    %1636 = vmatpush1.msra.mxu0 %v99
    %1637 = vmatprep.subr.mxu0 0.0
    %1638 = vmatpush1.msra.mxu0 0.0
    %1639 = vmatprep.subr.mxu0 0.0
    %1640 = vmatpush1.msra.mxu0 0.0
    %1641 = vmatprep.subr.mxu0 0.0
    %1642 = vmatpush1.msra.mxu0 0.0
    %1643 = vmatprep.subr.mxu0 0.0
    %1644 = vmatpush1.msra.mxu0 0.0
    %1645 = vmatprep.subr.mxu0 0.0
    %1646 = vmatpush1.msra.mxu0 0.0
    %1647 = vmatprep.subr.mxu0 0.0
    %1648 = vmatpush1.msra.mxu0 0.0
    %1649 = vmatprep.subr.mxu0 0.0
    %1650 = vmatpush1.msra.mxu0 0.0
    %1651 = vmatprep.subr.mxu0 0.0
    %1652 = vmatpush1.msra.mxu0 0.0
    %1653 = vmatprep.subr.mxu0 0.0
    %1654 = vmatpush1.msra.mxu0 0.0
    %1655 = vmatprep.subr.mxu0 0.0
    %1656 = vmatpush1.msra.mxu0 0.0
    %1657 = vmatprep.subr.mxu0 0.0
    %1658 = vmatpush1.msra.mxu0 0.0
    %1659 = vmatprep.subr.mxu0 0.0
    %1660 = vmatpush1.msra.mxu0 0.0
    %1661 = vmatprep.subr.mxu0 0.0
    %1662 = vmatpush1.msra.mxu0 0.0
    %1663 = vmatprep.subr.mxu0 0.0
    %1664 = vmatpush1.msra.mxu0 0.0
    %1665 = vmatprep.subr.mxu0 0.0
    %1666 = vmatpush1.msra.mxu0 0.0
    %1667 = vmatprep.subr.mxu0 0.0
    %1668 = vmatpush1.msra.mxu0 0.0
    %1669 = vmatprep.mubr.f32.mxu0 0.0
    %1670 = vmatmul.mubr.f32.gmra.mrb[0].mxu0 %v1604
    %v1671 = vpop.f32.mrb[0].mxu0
    %v1672 = vadd.f32 0.0, %v1671
    %v1673 = vpop.f32.mrb[0].mxu0
    %v1674 = vadd.f32 0.0, %v1673
    %1675 = vdwg.mxu0
    %1676 = vmatprep.subr.mxu0 %v42
    %1677 = vmatpush1.msra.mxu0 %v41
    %1678 = vmatprep.subr.mxu0 %v46
    %1679 = vmatpush1.msra.mxu0 %v45
    %1680 = vmatprep.subr.mxu0 %v50
    %1681 = vmatpush1.msra.mxu0 %v49
    %1682 = vmatprep.subr.mxu0 %v54
    %1683 = vmatpush1.msra.mxu0 %v53
    %1684 = vmatprep.subr.mxu0 %v58
    %1685 = vmatpush1.msra.mxu0 %v57
    %1686 = vmatprep.subr.mxu0 %v62
    %1687 = vmatpush1.msra.mxu0 %v61
    %1688 = vmatprep.subr.mxu0 %v66
    %1689 = vmatpush1.msra.mxu0 %v65
    %1690 = vmatprep.subr.mxu0 %v70
    %1691 = vmatpush1.msra.mxu0 %v69
    %1692 = vmatprep.subr.mxu0 %v74
    %1693 = vmatpush1.msra.mxu0 %v73
    %1694 = vmatprep.subr.mxu0 %v78
    %1695 = vmatpush1.msra.mxu0 %v77
    %1696 = vmatprep.subr.mxu0 %v82
    %1697 = vmatpush1.msra.mxu0 %v81
    %1698 = vmatprep.subr.mxu0 %v86
    %1699 = vmatpush1.msra.mxu0 %v85
    %1700 = vmatprep.subr.mxu0 %v90
    %1701 = vmatpush1.msra.mxu0 %v89
    %1702 = vmatprep.subr.mxu0 %v94
    %1703 = vmatpush1.msra.mxu0 %v93
    %1704 = vmatprep.subr.mxu0 %v98
    %1705 = vmatpush1.msra.mxu0 %v97
    %1706 = vmatprep.subr.mxu0 %v102
    %1707 = vmatpush1.msra.mxu0 %v101
    %1708 = vmatprep.subr.mxu0 0.0
    %1709 = vmatpush1.msra.mxu0 0.0
    %1710 = vmatprep.subr.mxu0 0.0
    %1711 = vmatpush1.msra.mxu0 0.0
    %1712 = vmatprep.subr.mxu0 0.0
    %1713 = vmatpush1.msra.mxu0 0.0
    %1714 = vmatprep.subr.mxu0 0.0
    %1715 = vmatpush1.msra.mxu0 0.0
    %1716 = vmatprep.subr.mxu0 0.0
    %1717 = vmatpush1.msra.mxu0 0.0
    %1718 = vmatprep.subr.mxu0 0.0
    %1719 = vmatpush1.msra.mxu0 0.0
    %1720 = vmatprep.subr.mxu0 0.0
    %1721 = vmatpush1.msra.mxu0 0.0
    %1722 = vmatprep.subr.mxu0 0.0
    %1723 = vmatpush1.msra.mxu0 0.0
    %1724 = vmatprep.subr.mxu0 0.0
    %1725 = vmatpush1.msra.mxu0 0.0
    %1726 = vmatprep.subr.mxu0 0.0
    %1727 = vmatpush1.msra.mxu0 0.0
    %1728 = vmatprep.subr.mxu0 0.0
    %1729 = vmatpush1.msra.mxu0 0.0
    %1730 = vmatprep.subr.mxu0 0.0
    %1731 = vmatpush1.msra.mxu0 0.0
    %1732 = vmatprep.subr.mxu0 0.0
    %1733 = vmatpush1.msra.mxu0 0.0
    %1734 = vmatprep.subr.mxu0 0.0
    %1735 = vmatpush1.msra.mxu0 0.0
    %1736 = vmatprep.subr.mxu0 0.0
    %1737 = vmatpush1.msra.mxu0 0.0
    %1738 = vmatprep.subr.mxu0 0.0
    %1739 = vmatpush1.msra.mxu0 0.0
    %1740 = vmatprep.mubr.f32.mxu0 0.0
    %1741 = vmatmul.mubr.f32.gmra.mrb[0].mxu0 %v1604
    %v1742 = vpop.f32.mrb[0].mxu0
    %v1743 = vadd.f32 0.0, %v1742
    %v1744 = vpop.f32.mrb[0].mxu0
    %v1745 = vadd.f32 0.0, %v1744
    %1746 = vdwg.mxu0
    %v1747 = vadd.f32 %v298, %v1672
    %v1748 = vadd.f32 %v300, %v1674
    %v1749 = vadd.f32 %v411, %v1743
    %v1750 = vadd.f32 %v413, %v1745
    %v1751 = vxor.u32 %v1747, 2147483648
    %v1752 = vmul.f32 %v1751, 1.442695
    %v1753 = vpow.pop %v1752
    %v1754 = vadd.f32 %v1753, 1.0
    %v1755 = vrcp.pop %v1754
    %v1756 = vmul.f32 1.0, %v1755
    %v1757 = vxor.u32 %v1748, 2147483648
    %v1758 = vmul.f32 %v1757, 1.442695
    %v1759 = vpow.pop %v1758
    %v1760 = vadd.f32 %v1759, 1.0
    %v1761 = vrcp.pop %v1760
    %v1762 = vmul.f32 1.0, %v1761
    %v1763 = vtanh.pop %v1749
    %v1764 = vxor.u32 %v1750, 2147483648
    %v1765 = vmul.f32 %v1764, 1.442695
    %v1766 = vpow.pop %v1765
    %v1767 = vadd.f32 %v1766, 1.0
    %v1768 = vrcp.pop %v1767
    %v1769 = vmul.f32 1.0, %v1768
    %v1770 = vmul.f32 %v1762, %v1602
    %v1771 = vmul.f32 %v1756, %v1763
    %v1772 = vadd.f32 %v1770, %v1771
    %v1773 = vtanh.pop %v1772
    %v1774 = vmul.f32 %v1769, %v1773
    %v1775 = vld [vmem:[#allocation2] sm:$0x1]
    %v1777 = vlaneseq
    %v1778 = vshrl.u32 %v1777, 7
    %v1779 = vsub.s32 0, %v1778
    %v1780 = vrot.slane %v1775, %v1779
    %1782 = vmatprep.subr.mxu0 0.0
    %1783 = vmatpush1.msra.mxu0 %v103
    %1784 = vmatprep.subr.mxu0 0.0
    %1785 = vmatpush1.msra.mxu0 %v104
    %1786 = vmatprep.subr.mxu0 0.0
    %1787 = vmatpush1.msra.mxu0 %v105
    %1788 = vmatprep.subr.mxu0 0.0
    %1789 = vmatpush1.msra.mxu0 %v106
    %1790 = vmatprep.subr.mxu0 0.0
    %1791 = vmatpush1.msra.mxu0 %v107
    %1792 = vmatprep.subr.mxu0 0.0
    %1793 = vmatpush1.msra.mxu0 %v108
    %1794 = vmatprep.subr.mxu0 0.0
    %1795 = vmatpush1.msra.mxu0 %v109
    %1796 = vmatprep.subr.mxu0 0.0
    %1797 = vmatpush1.msra.mxu0 %v110
    %1798 = vmatprep.subr.mxu0 0.0
    %1799 = vmatpush1.msra.mxu0 %v111
    %1800 = vmatprep.subr.mxu0 0.0
    %1801 = vmatpush1.msra.mxu0 %v112
    %1802 = vmatprep.subr.mxu0 0.0
    %1803 = vmatpush1.msra.mxu0 %v113
    %1804 = vmatprep.subr.mxu0 0.0
    %1805 = vmatpush1.msra.mxu0 %v114
    %1806 = vmatprep.subr.mxu0 0.0
    %1807 = vmatpush1.msra.mxu0 %v115
    %1808 = vmatprep.subr.mxu0 0.0
    %1809 = vmatpush1.msra.mxu0 %v116
    %1810 = vmatprep.subr.mxu0 0.0
    %1811 = vmatpush1.msra.mxu0 %v117
    %1812 = vmatprep.subr.mxu0 0.0
    %1813 = vmatpush1.msra.mxu0 %v118
    %1814 = vmatprep.subr.mxu0 0.0
    %1815 = vmatpush1.msra.mxu0 0.0
    %1816 = vmatprep.subr.mxu0 0.0
    %1817 = vmatpush1.msra.mxu0 0.0
    %1818 = vmatprep.subr.mxu0 0.0
    %1819 = vmatpush1.msra.mxu0 0.0
    %1820 = vmatprep.subr.mxu0 0.0
    %1821 = vmatpush1.msra.mxu0 0.0
    %1822 = vmatprep.subr.mxu0 0.0
    %1823 = vmatpush1.msra.mxu0 0.0
    %1824 = vmatprep.subr.mxu0 0.0
    %1825 = vmatpush1.msra.mxu0 0.0
    %1826 = vmatprep.subr.mxu0 0.0
    %1827 = vmatpush1.msra.mxu0 0.0
    %1828 = vmatprep.subr.mxu0 0.0
    %1829 = vmatpush1.msra.mxu0 0.0
    %1830 = vmatprep.subr.mxu0 0.0
    %1831 = vmatpush1.msra.mxu0 0.0
    %1832 = vmatprep.subr.mxu0 0.0
    %1833 = vmatpush1.msra.mxu0 0.0
    %1834 = vmatprep.subr.mxu0 0.0
    %1835 = vmatpush1.msra.mxu0 0.0
    %1836 = vmatprep.subr.mxu0 0.0
    %1837 = vmatpush1.msra.mxu0 0.0
    %1838 = vmatprep.subr.mxu0 0.0
    %1839 = vmatpush1.msra.mxu0 0.0
    %1840 = vmatprep.subr.mxu0 0.0
    %1841 = vmatpush1.msra.mxu0 0.0
    %1842 = vmatprep.subr.mxu0 0.0
    %1843 = vmatpush1.msra.mxu0 0.0
    %1844 = vmatprep.subr.mxu0 0.0
    %1845 = vmatpush1.msra.mxu0 0.0
    %1846 = vmatprep.mubr.f32.mxu0 0.0
    %1847 = vmatmul.mubr.f32.gmra.mrb[0].mxu0 %v584
    %v1848 = vpop.f32.mrb[0].mxu0
    %v1849 = vadd.f32 %v1780, %v1848
    %v1850 = vpop.f32.mrb[0].mxu0
    %1851 = vmatprep.mubr.f32.mxu0 0.0
    %1852 = vmatmul.mubr.f32.gmra.mrb[0].mxu0 %v754
    %v1853 = vpop.f32.mrb[0].mxu0
    %v1854 = vadd.f32 %v1780, %v1853
    %v1855 = vpop.f32.mrb[0].mxu0
    %1856 = vmatprep.mubr.f32.mxu0 0.0
    %1857 = vmatmul.mubr.f32.gmra.mrb[0].mxu0 %v924
    %v1858 = vpop.f32.mrb[0].mxu0
    %v1859 = vadd.f32 %v1780, %v1858
    %v1860 = vpop.f32.mrb[0].mxu0
    %1861 = vmatprep.mubr.f32.mxu0 0.0
    %1862 = vmatmul.mubr.f32.gmra.mrb[0].mxu0 %v1094
    %v1863 = vpop.f32.mrb[0].mxu0
    %v1864 = vadd.f32 %v1780, %v1863
    %v1865 = vpop.f32.mrb[0].mxu0
    %1866 = vmatprep.mubr.f32.mxu0 0.0
    %1867 = vmatmul.mubr.f32.gmra.mrb[0].mxu0 %v1264
    %v1868 = vpop.f32.mrb[0].mxu0
    %v1869 = vadd.f32 %v1780, %v1868
    %v1870 = vpop.f32.mrb[0].mxu0
    %1871 = vmatprep.mubr.f32.mxu0 0.0
    %1872 = vmatmul.mubr.f32.gmra.mrb[0].mxu0 %v1434
    %v1873 = vpop.f32.mrb[0].mxu0
    %v1874 = vadd.f32 %v1780, %v1873
    %v1875 = vpop.f32.mrb[0].mxu0
    %1876 = vmatprep.mubr.f32.mxu0 0.0
    %1877 = vmatmul.mubr.f32.gmra.mrb[0].mxu0 %v1604
    %v1878 = vpop.f32.mrb[0].mxu0
    %v1879 = vadd.f32 %v1780, %v1878
    %v1880 = vpop.f32.mrb[0].mxu0
    %1881 = vmatprep.mubr.f32.mxu0 0.0
    %1882 = vmatmul.mubr.f32.gmra.mrb[0].mxu0 %v1774
    %v1883 = vpop.f32.mrb[0].mxu0
    %v1884 = vadd.f32 %v1780, %v1883
    %v1885 = vpop.f32.mrb[0].mxu0
    %1886 = vdwg.mxu0
    %vm1887 = vcmask 7168
    %1888 = vst.msk [vmem:[%s6] sm:$0xff] %vm1887, %v1849
    %1889 = vst.msk [vmem:[%s6 + $0x8] sm:$0xff] %vm1887, %v1854
    %1890 = vst.msk [vmem:[%s6 + $0x10] sm:$0xff] %vm1887, %v1859
    %1891 = vst.msk [vmem:[%s6 + $0x18] sm:$0xff] %vm1887, %v1864
    %1892 = vst.msk [vmem:[%s6 + $0x20] sm:$0xff] %vm1887, %v1869
    %1893 = vst.msk [vmem:[%s6 + $0x28] sm:$0xff] %vm1887, %v1874
    %1894 = vst.msk [vmem:[%s6 + $0x30] sm:$0xff] %vm1887, %v1879
    %1895 = vst.msk [vmem:[%s6 + $0x38] sm:$0xff] %vm1887, %v1884
    // Predicated region
    $region30: #{tpu_custom_call.1} parent=1 // pred_check
      _
    $region31: #{tpu_custom_call.1} parent=1 // pred_check_branch
      %1897 = sbr.rel (0) target = $region33
    $region32: #{tpu_custom_call.1} parent=1 // pred_region
      _
    $region33: #{tpu_custom_call.1} parent=1 // pred_fallthru
      _
    // Predicated region
    $region34: #{tpu_custom_call.1} parent=1 // pred_check
      _
    $region35: #{tpu_custom_call.1} parent=1 // pred_check_branch
      %1899 = sbr.rel (0) target = $region37
    $region36: #{tpu_custom_call.1} parent=1 // pred_region
      _
    $region37: #{tpu_custom_call.1} parent=1 // pred_fallthru
      _
    %1900 = vsyncpa [#allocation4], 1

</llo_original>
